<compile_context>
chip_gen: v7x
topology: tpu7x:2x2x1
jax: 0.10.0
libtpu: 0.0.40
codegen_flags: <defaults>
</compile_context>

<pallas_src>
import functools

import jax
import jax.numpy as jnp
from jax import lax
from jax.experimental import pallas as pl
from jax.experimental.pallas import tpu as pltpu

LANE = 128          # TPU lane width
TILE_ROWS = 256     # row tile for linears + aggregation (v6e/v7x 256x256 MXU native)
TILE_K = 256        # contraction tile for A_hat @ (.)  (bounds VMEM independent of N)


def _round_up(x, m):
    return (x + m - 1) // m * m


@functools.lru_cache(maxsize=1)
def _vmem_limit_bytes():
    # ~96 MiB scoped on v5e/v6e (128 MiB physical), ~48 MiB on v7x (64 MiB physical).
    try:
        cap = pltpu.get_tpu_info().vmem_capacity_bytes
    except Exception:
        cap = 64 * 1024 * 1024
    return int(min(cap * 3 // 4, 100 * 1024 * 1024))


def _compiler_params(dimension_semantics):
    return pltpu.CompilerParams(
        dimension_semantics=dimension_semantics,
        vmem_limit_bytes=_vmem_limit_bytes(),
    )


# ---------------------------------------------------------------------------
# Kernel 1: hoisted dense linear  XW1 = X @ W1^T + b1   (computed once, row-tiled)
#   x: [TILE_ROWS, F_pad] bf16, wt: [F_pad, H_pad] bf16, b: [1, H_pad] f32
# ---------------------------------------------------------------------------
def linear_kernel(x_ref, wt_ref, b_ref, y_ref):
    acc = jnp.dot(x_ref[...], wt_ref[...], preferred_element_type=jnp.float32)
    y_ref[...] = (acc + b_ref[...]).astype(y_ref.dtype)


def linear(x, wt, b, *, tile_rows=TILE_ROWS):
    n_pad, f_pad = x.shape
    o_pad = wt.shape[1]
    return pl.pallas_call(
        linear_kernel,
        out_shape=jax.ShapeDtypeStruct((n_pad, o_pad), jnp.bfloat16),
        grid_spec=pltpu.PrefetchScalarGridSpec(
            num_scalar_prefetch=0,
            grid=(n_pad // tile_rows,),
            in_specs=[pl.BlockSpec((tile_rows, f_pad), lambda i: (i, 0)),
                      pl.BlockSpec((f_pad, o_pad), lambda i: (0, 0)),
                      pl.BlockSpec((1, o_pad), lambda i: (0, 0))],
            out_specs=pl.BlockSpec((tile_rows, o_pad), lambda i: (i, 0))),
        compiler_params=_compiler_params(("parallel",)),
    )(x, wt, b)


# ---------------------------------------------------------------------------
# Kernel 2 (conv1 propagate + relu + conv2 lin, fused, K-tiled):
#   acc += A_hat[i,k] @ XW1[k]             (f32 VMEM accumulator)
#   on last k:  HW2[i] = relu(acc) @ W2^T + b2
# ---------------------------------------------------------------------------
def agg_relu_linear_kernel(ahat_ref, xw_ref, w2t_ref, b2_ref, out_ref, acc_ref):
    k = pl.program_id(1)

    @pl.when(k == 0)
    def _():
        acc_ref[...] = jnp.zeros_like(acc_ref)

    acc_ref[...] += jnp.dot(ahat_ref[...], xw_ref[...],
                            preferred_element_type=jnp.float32)

    @pl.when(k == pl.num_programs(1) - 1)
    def _():
        h = jnp.maximum(acc_ref[...], 0.0).astype(jnp.bfloat16)
        hw2 = jnp.dot(h, w2t_ref[...], preferred_element_type=jnp.float32) + b2_ref[...]
        out_ref[...] = hw2.astype(out_ref.dtype)


def aggregate_relu_linear(ahat, xw1, w2t, b2, *, tile_rows=TILE_ROWS, tile_k=TILE_K):
    n_pad = ahat.shape[0]
    h_pad = xw1.shape[1]
    c_pad = w2t.shape[1]
    return pl.pallas_call(
        agg_relu_linear_kernel,
        out_shape=jax.ShapeDtypeStruct((n_pad, c_pad), jnp.bfloat16),
        grid_spec=pltpu.PrefetchScalarGridSpec(
            num_scalar_prefetch=0,
            grid=(n_pad // tile_rows, n_pad // tile_k),
            in_specs=[pl.BlockSpec((tile_rows, tile_k), lambda i, k: (i, k)),  # A_hat tile
                      pl.BlockSpec((tile_k, h_pad), lambda i, k: (k, 0)),      # XW1 K-slab
                      pl.BlockSpec((h_pad, c_pad), lambda i, k: (0, 0)),       # W2^T resident
                      pl.BlockSpec((1, c_pad), lambda i, k: (0, 0))],          # b2 resident
            out_specs=pl.BlockSpec((tile_rows, c_pad), lambda i, k: (i, 0)),
            scratch_shapes=[pltpu.VMEM((tile_rows, h_pad), jnp.float32)]),
        compiler_params=_compiler_params(("parallel", "arbitrary")),
    )(ahat, xw1, w2t, b2)


# ---------------------------------------------------------------------------
# Kernel 3 (conv2 propagate + log_softmax, K-tiled):
#   acc += A_hat[i,k] @ HW2[k]
#   on last k: mask padded class lanes, numerically-stable log_softmax, padded lanes -> 0
# ---------------------------------------------------------------------------
def agg_logsoftmax_kernel(ahat_ref, hw_ref, out_ref, acc_ref, *, num_classes):
    k = pl.program_id(1)

    @pl.when(k == 0)
    def _():
        acc_ref[...] = jnp.zeros_like(acc_ref)

    acc_ref[...] += jnp.dot(ahat_ref[...], hw_ref[...],
                            preferred_element_type=jnp.float32)

    @pl.when(k == pl.num_programs(1) - 1)
    def _():
        z = acc_ref[...]
        col = lax.broadcasted_iota(jnp.int32, z.shape, 1)
        valid = col < num_classes
        zm = jnp.where(valid, z, -jnp.inf)
        m = jnp.max(zm, axis=1, keepdims=True)
        s = zm - m
        lse = jnp.log(jnp.sum(jnp.where(valid, jnp.exp(s), 0.0), axis=1, keepdims=True))
        out_ref[...] = jnp.where(valid, s - lse, 0.0)


def aggregate_logsoftmax(ahat, hw2, *, num_classes, tile_rows=TILE_ROWS, tile_k=TILE_K):
    n_pad = ahat.shape[0]
    c_pad = hw2.shape[1]
    return pl.pallas_call(
        functools.partial(agg_logsoftmax_kernel, num_classes=num_classes),
        out_shape=jax.ShapeDtypeStruct((n_pad, c_pad), jnp.float32),
        grid_spec=pltpu.PrefetchScalarGridSpec(
            num_scalar_prefetch=0,
            grid=(n_pad // tile_rows, n_pad // tile_k),
            in_specs=[pl.BlockSpec((tile_rows, tile_k), lambda i, k: (i, k)),  # A_hat tile
                      pl.BlockSpec((tile_k, c_pad), lambda i, k: (k, 0))],     # HW2 K-slab
            out_specs=pl.BlockSpec((tile_rows, c_pad), lambda i, k: (i, 0)),
            scratch_shapes=[pltpu.VMEM((tile_rows, c_pad), jnp.float32)]),
        compiler_params=_compiler_params(("parallel", "arbitrary")),
    )(ahat, hw2)


# ---------------------------------------------------------------------------
# Full forward pass (padded inputs; returns padded [N_pad, C_pad] log-probs)
# ---------------------------------------------------------------------------
@functools.partial(jax.jit, static_argnames="num_classes")
def gcn_net_forward(ahat_bf16, x_pad, w1t_pad, b1_pad, w2t_pad, b2_pad, *, num_classes):
    # conv1 lin (hoisted, computed once).  The custom GCNConv applies lin (incl. bias)
    # BEFORE propagate, so the bias is folded here by design.
    xw1 = linear(x_pad, w1t_pad, b1_pad)                               # [N_pad, H_pad] bf16
    # conv1 propagate + relu + (dropout == identity in eval) + conv2 lin, fused:
    hw2 = aggregate_relu_linear(ahat_bf16, xw1, w2t_pad, b2_pad)       # [N_pad, C_pad] bf16
    # conv2 propagate + log_softmax:
    return aggregate_logsoftmax(ahat_bf16, hw2, num_classes=num_classes)  # [N_pad, C_pad] f32


# ---------------------------------------------------------------------------
# Graph preprocessing (replicates the module's add_self_loops + sym normalization:
#   deg from col, norm = d^-1/2[row]*d^-1/2[col], out[col] += norm * x[row])
# ---------------------------------------------------------------------------
def build_normalized_adjacency(edge_index, num_nodes):
    row, col = edge_index[0], edge_index[1]
    loops = jnp.arange(num_nodes, dtype=row.dtype)
    row = jnp.concatenate([row, loops])
    col = jnp.concatenate([col, loops])
    deg = jnp.zeros((num_nodes,), jnp.float32).at[col].add(1.0)
    deg_inv_sqrt = jnp.power(deg, -0.5)
    deg_inv_sqrt = jnp.where(jnp.isinf(deg_inv_sqrt), 0.0, deg_inv_sqrt)
    norm = deg_inv_sqrt[row] * deg_inv_sqrt[col]
    ahat = jnp.zeros((num_nodes, num_nodes), jnp.float32).at[col, row].add(norm)
    return ahat


def _pad2d(a, rows, cols):
    return jnp.pad(a, ((0, rows - a.shape[0]), (0, cols - a.shape[1])))


def reference_forward(ahat_f32, x, w1, b1, w2, b2):
    h = x @ w1.T + b1
    h = ahat_f32 @ h
    h = jnp.maximum(h, 0.0)
    h2 = h @ w2.T + b2
    h2 = ahat_f32 @ h2
    return jax.nn.log_softmax(h2, axis=1)


if __name__ == "__main__":
    # Small synthetic graph consistent with the module:
    #   N nodes, F_IN node features, hidden=16, C classes.
    N, F_IN, HIDDEN, C = 256, 8, 16, 4
    NUM_EDGES = 1024

    key = jax.random.PRNGKey(0)
    kx, ke1, ke2, kw1, kb1, kw2, kb2 = jax.random.split(key, 7)

    x = jax.random.normal(kx, (N, F_IN), dtype=jnp.float32)
    row = jax.random.randint(ke1, (NUM_EDGES,), 0, N, dtype=jnp.int32)
    col = jax.random.randint(ke2, (NUM_EDGES,), 0, N, dtype=jnp.int32)
    edge_index = jnp.stack([row, col], axis=0)                   # [2, E]

    # Deterministic parameter init (Linear weights [out, in], biases [1, out]).
    w1 = jax.random.normal(kw1, (HIDDEN, F_IN), dtype=jnp.float32) * 0.1
    b1 = jax.random.normal(kb1, (1, HIDDEN), dtype=jnp.float32) * 0.1
    w2 = jax.random.normal(kw2, (C, HIDDEN), dtype=jnp.float32) * 0.1
    b2 = jax.random.normal(kb2, (1, C), dtype=jnp.float32) * 0.1

    ahat = build_normalized_adjacency(edge_index, N)             # [N, N] f32

    # --- host-side layout plumbing: pad to lane/tile width, pre-transpose, cast ---
    N_PAD = _round_up(N, TILE_ROWS)
    F_PAD = _round_up(F_IN, LANE)
    H_PAD = _round_up(HIDDEN, LANE)
    C_PAD = _round_up(C, LANE)

    ahat_bf16 = _pad2d(ahat, N_PAD, N_PAD).astype(jnp.bfloat16)  # bf16 aggregation operand
    x_pad = _pad2d(x, N_PAD, F_PAD).astype(jnp.bfloat16)
    w1t_pad = _pad2d(w1.T, F_PAD, H_PAD).astype(jnp.bfloat16)    # [F_pad, H_pad]
    b1_pad = _pad2d(b1, 1, H_PAD)                                # f32 bias
    w2t_pad = _pad2d(w2.T, H_PAD, C_PAD).astype(jnp.bfloat16)    # [H_pad, C_pad]
    b2_pad = _pad2d(b2, 1, C_PAD)                                # f32 bias

    out_pad = gcn_net_forward(ahat_bf16, x_pad, w1t_pad, b1_pad, w2t_pad, b2_pad,
                              num_classes=C)
    jax.block_until_ready(out_pad)
    out = out_pad[:N, :C]

    # sanity checks
    assert out.shape == (N, C)
    assert bool(jnp.all(jnp.isfinite(out_pad)))                  # no -inf/NaN in padded buffer
    assert jnp.allclose(jnp.sum(jnp.exp(out), axis=1), 1.0, atol=1e-4)
    ref = reference_forward(ahat, x, w1, b1, w2, b2)
    assert jnp.allclose(out, ref, atol=5e-2), float(jnp.max(jnp.abs(out - ref)))

    print("KERNEL_OK")
</pallas_src>

<mosaic_0001>
module attributes {stable_mosaic.version = 11 : i64} {
  func.func @linear_kernel(%arg0: i32, %arg1: memref<256x128xbf16, #tpu.memory_space<vmem>>, %arg2: memref<128x128xbf16, #tpu.memory_space<vmem>>, %arg3: memref<1x128xf32, #tpu.memory_space<vmem>>, %arg4: memref<256x128xbf16, #tpu.memory_space<vmem>>) attributes {dimension_semantics = [#tpu.dimension_semantics<parallel>], iteration_bounds = array<i64: 1>, scalar_prefetch = 0 : i64, scratch_operands = 0 : i64, tpu.core_type = #tpu.core_type<tc>, window_params = [{transform_indices = @transform_0, window_bounds = array<i64: 256, 128>}, {pipeline_mode = #tpu.pipeline_mode<synchronous>, transform_indices = @transform_1, window_bounds = array<i64: 128, 128>}, {pipeline_mode = #tpu.pipeline_mode<synchronous>, transform_indices = @transform_2, window_bounds = array<i64: 1, 128>}, {transform_indices = @transform_3, window_bounds = array<i64: 256, 128>}]} {
    %c0 = arith.constant 0 : index
    %c0_0 = arith.constant 0 : index
    %0 = vector.load %arg1[%c0, %c0_0] : memref<256x128xbf16, #tpu.memory_space<vmem>>, vector<256x128xbf16>
    %c0_1 = arith.constant 0 : index
    %c0_2 = arith.constant 0 : index
    %1 = vector.load %arg2[%c0_1, %c0_2] : memref<128x128xbf16, #tpu.memory_space<vmem>>, vector<128x128xbf16>
    %cst = arith.constant dense<0.000000e+00> : vector<256x128xf32>
    %2 = tpu.matmul %0, %1, %cst {dimension_numbers = #tpu.dot_dimension_numbers<[1], [0], [0], [1], [0, 0, 1, 1], [], []>} : vector<256x128xbf16>, vector<128x128xbf16>, vector<256x128xf32> -> vector<256x128xf32>
    %c0_3 = arith.constant 0 : index
    %c0_4 = arith.constant 0 : index
    %3 = vector.load %arg3[%c0_3, %c0_4] : memref<1x128xf32, #tpu.memory_space<vmem>>, vector<1x128xf32>
    %4 = vector.broadcast %3 : vector<1x128xf32> to vector<256x128xf32>
    %5 = arith.addf %2, %4 : vector<256x128xf32>
    %6 = arith.truncf %5 : vector<256x128xf32> to vector<256x128xbf16>
    %c0_5 = arith.constant 0 : index
    %c0_6 = arith.constant 0 : index
    %7 = vector.load %arg4[%c0_5, %c0_6] : memref<256x128xbf16, #tpu.memory_space<vmem>>, vector<256x128xbf16>
    tpu.vector_store %arg4[%c0_5, %c0_6], %6 {strides = array<i32>} : memref<256x128xbf16, #tpu.memory_space<vmem>>, vector<256x128xbf16>,
    return
  }
  func.func @transform_0(%arg0: i32) -> (i32, i32) {
    %c0_i32 = arith.constant 0 : i32
    %c0_i32_0 = arith.constant 0 : i32
    return %arg0, %c0_i32 : i32, i32
  }
  func.func @transform_1(%arg0: i32) -> (i32, i32) {
    %c0_i32 = arith.constant 0 : i32
    %c0_i32_0 = arith.constant 0 : i32
    %c0_i32_1 = arith.constant 0 : i32
    return %c0_i32, %c0_i32_0 : i32, i32
  }
  func.func @transform_2(%arg0: i32) -> (i32, i32) {
    %c0_i32 = arith.constant 0 : i32
    %c0_i32_0 = arith.constant 0 : i32
    %c0_i32_1 = arith.constant 0 : i32
    return %c0_i32, %c0_i32_0 : i32, i32
  }
  func.func @transform_3(%arg0: i32) -> (i32, i32) {
    %c0_i32 = arith.constant 0 : i32
    %c0_i32_0 = arith.constant 0 : i32
    return %arg0, %c0_i32 : i32, i32
  }
}

module attributes {stable_mosaic.version = 11 : i64} {
  func.func @agg_logsoftmax_kernel(%arg0: i32, %arg1: i32, %arg2: memref<256x256xbf16, #tpu.memory_space<vmem>>, %arg3: memref<256x128xbf16, #tpu.memory_space<vmem>>, %arg4: memref<256x128xf32, #tpu.memory_space<vmem>>, %arg5: memref<256x128xf32, #tpu.memory_space<vmem>>) attributes {dimension_semantics = [#tpu.dimension_semantics<parallel>, #tpu.dimension_semantics<arbitrary>], iteration_bounds = array<i64: 1, 1>, scalar_prefetch = 0 : i64, scratch_operands = 1 : i64, tpu.core_type = #tpu.core_type<tc>, window_params = [{transform_indices = @transform_0, window_bounds = array<i64: 256, 256>}, {transform_indices = @transform_1, window_bounds = array<i64: 256, 128>}, {transform_indices = @transform_2, window_bounds = array<i64: 256, 128>}]} {
    %c0_i32 = arith.constant 0 : i32
    %0 = arith.cmpi eq, %arg1, %c0_i32 : i32
    %1 = arith.extui %0 : i1 to i32
    %c0_i32_0 = arith.constant 0 : i32
    %2 = arith.cmpi ne, %1, %c0_i32_0 : i32
    scf.if %2 {
      %cst_10 = arith.constant 0.000000e+00 : f32
      %12 = vector.broadcast %cst_10 : f32 to vector<256x128xf32>
      %c0_11 = arith.constant 0 : index
      %c0_12 = arith.constant 0 : index
      %13 = vector.load %arg5[%c0_11, %c0_12] : memref<256x128xf32, #tpu.memory_space<vmem>>, vector<256x128xf32>
      tpu.vector_store %arg5[%c0_11, %c0_12], %12 {strides = array<i32>} : memref<256x128xf32, #tpu.memory_space<vmem>>, vector<256x128xf32>,
    } else {
    }
    %c0 = arith.constant 0 : index
    %c0_1 = arith.constant 0 : index
    %3 = vector.load %arg5[%c0, %c0_1] : memref<256x128xf32, #tpu.memory_space<vmem>>, vector<256x128xf32>
    %c0_2 = arith.constant 0 : index
    %c0_3 = arith.constant 0 : index
    %4 = vector.load %arg2[%c0_2, %c0_3] : memref<256x256xbf16, #tpu.memory_space<vmem>>, vector<256x256xbf16>
    %c0_4 = arith.constant 0 : index
    %c0_5 = arith.constant 0 : index
    %5 = vector.load %arg3[%c0_4, %c0_5] : memref<256x128xbf16, #tpu.memory_space<vmem>>, vector<256x128xbf16>
    %cst = arith.constant dense<0.000000e+00> : vector<256x128xf32>
    %6 = tpu.matmul %4, %5, %cst {dimension_numbers = #tpu.dot_dimension_numbers<[1], [0], [0], [1], [0, 0, 1, 1], [], []>} : vector<256x256xbf16>, vector<256x128xbf16>, vector<256x128xf32> -> vector<256x128xf32>
    %7 = arith.addf %3, %6 : vector<256x128xf32>
    %c0_6 = arith.constant 0 : index
    %c0_7 = arith.constant 0 : index
    %8 = vector.load %arg5[%c0_6, %c0_7] : memref<256x128xf32, #tpu.memory_space<vmem>>, vector<256x128xf32>
    tpu.vector_store %arg5[%c0_6, %c0_7], %7 {strides = array<i32>} : memref<256x128xf32, #tpu.memory_space<vmem>>, vector<256x128xf32>,
    %c0_i32_8 = arith.constant 0 : i32
    %9 = arith.cmpi eq, %arg1, %c0_i32_8 : i32
    %10 = arith.extui %9 : i1 to i32
    %c0_i32_9 = arith.constant 0 : i32
    %11 = arith.cmpi ne, %10, %c0_i32_9 : i32
    scf.if %11 {
      %c0_10 = arith.constant 0 : index
      %c0_11 = arith.constant 0 : index
      %12 = vector.load %arg5[%c0_10, %c0_11] : memref<256x128xf32, #tpu.memory_space<vmem>>, vector<256x128xf32>
      %13 = tpu.iota {dimensions = array<i32: 1>} : vector<256x128xi32>
      %c4_i32 = arith.constant 4 : i32
      %14 = vector.broadcast %c4_i32 : i32 to vector<256x128xi32>
      %15 = arith.cmpi slt, %13, %14 : vector<256x128xi32>
      %cst_12 = arith.constant 0xFF800000 : f32
      %16 = vector.broadcast %cst_12 : f32 to vector<256x128xf32>
      %17 = arith.select %15, %12, %16 : vector<256x128xi1>, vector<256x128xf32>
      %cst_13 = arith.constant dense<0xFF800000> : vector<256xf32>
      %18 = vector.multi_reduction <maximumf>, %17, %cst_13 [1] : vector<256x128xf32> to vector<256xf32>
      %19 = vector.shape_cast %18 : vector<256xf32> to vector<256x1xf32>
      %20 = vector.broadcast %19 : vector<256x1xf32> to vector<256x128xf32>
      %21 = arith.subf %17, %20 : vector<256x128xf32>
      %22 = math.exp %21 : vector<256x128xf32>
      %cst_14 = arith.constant 0.000000e+00 : f32
      %23 = vector.broadcast %cst_14 : f32 to vector<256x128xf32>
      %24 = arith.select %15, %22, %23 : vector<256x128xi1>, vector<256x128xf32>
      %cst_15 = arith.constant dense<0.000000e+00> : vector<256xf32>
      %25 = vector.multi_reduction <add>, %24, %cst_15 [1] : vector<256x128xf32> to vector<256xf32>
      %26 = vector.shape_cast %25 : vector<256xf32> to vector<256x1xf32>
      %27 = math.log %26 : vector<256x1xf32>
      %28 = vector.broadcast %27 : vector<256x1xf32> to vector<256x128xf32>
      %29 = arith.subf %21, %28 : vector<256x128xf32>
      %cst_16 = arith.constant 0.000000e+00 : f32
      %30 = vector.broadcast %cst_16 : f32 to vector<256x128xf32>
      %31 = arith.select %15, %29, %30 : vector<256x128xi1>, vector<256x128xf32>
      %c0_17 = arith.constant 0 : index
      %c0_18 = arith.constant 0 : index
      %32 = vector.load %arg4[%c0_17, %c0_18] : memref<256x128xf32, #tpu.memory_space<vmem>>, vector<256x128xf32>
      tpu.vector_store %arg4[%c0_17, %c0_18], %31 {strides = array<i32>} : memref<256x128xf32, #tpu.memory_space<vmem>>, vector<256x128xf32>,
    } else {
    }
    return
  }
  func.func @transform_0(%arg0: i32, %arg1: i32) -> (i32, i32) {
    %c0_i32 = arith.constant 0 : i32
    return %arg0, %arg1 : i32, i32
  }
  func.func @transform_1(%arg0: i32, %arg1: i32) -> (i32, i32) {
    %c0_i32 = arith.constant 0 : i32
    %c0_i32_0 = arith.constant 0 : i32
    return %arg1, %c0_i32 : i32, i32
  }
  func.func @transform_2(%arg0: i32, %arg1: i32) -> (i32, i32) {
    %c0_i32 = arith.constant 0 : i32
    %c0_i32_0 = arith.constant 0 : i32
    return %arg0, %c0_i32 : i32, i32
  }
}

module attributes {stable_mosaic.version = 11 : i64} {
  func.func @agg_relu_linear_kernel(%arg0: i32, %arg1: i32, %arg2: memref<256x256xbf16, #tpu.memory_space<vmem>>, %arg3: memref<256x128xbf16, #tpu.memory_space<vmem>>, %arg4: memref<128x128xbf16, #tpu.memory_space<vmem>>, %arg5: memref<1x128xf32, #tpu.memory_space<vmem>>, %arg6: memref<256x128xbf16, #tpu.memory_space<vmem>>, %arg7: memref<256x128xf32, #tpu.memory_space<vmem>>) attributes {dimension_semantics = [#tpu.dimension_semantics<parallel>, #tpu.dimension_semantics<arbitrary>], iteration_bounds = array<i64: 1, 1>, scalar_prefetch = 0 : i64, scratch_operands = 1 : i64, tpu.core_type = #tpu.core_type<tc>, window_params = [{transform_indices = @transform_0, window_bounds = array<i64: 256, 256>}, {transform_indices = @transform_1, window_bounds = array<i64: 256, 128>}, {pipeline_mode = #tpu.pipeline_mode<synchronous>, transform_indices = @transform_2, window_bounds = array<i64: 128, 128>}, {pipeline_mode = #tpu.pipeline_mode<synchronous>, transform_indices = @transform_3, window_bounds = array<i64: 1, 128>}, {transform_indices = @transform_4, window_bounds = array<i64: 256, 128>}]} {
    %c0_i32 = arith.constant 0 : i32
    %0 = arith.cmpi eq, %arg1, %c0_i32 : i32
    %1 = arith.extui %0 : i1 to i32
    %c0_i32_0 = arith.constant 0 : i32
    %2 = arith.cmpi ne, %1, %c0_i32_0 : i32
    scf.if %2 {
      %cst_10 = arith.constant 0.000000e+00 : f32
      %12 = vector.broadcast %cst_10 : f32 to vector<256x128xf32>
      %c0_11 = arith.constant 0 : index
      %c0_12 = arith.constant 0 : index
      %13 = vector.load %arg7[%c0_11, %c0_12] : memref<256x128xf32, #tpu.memory_space<vmem>>, vector<256x128xf32>
      tpu.vector_store %arg7[%c0_11, %c0_12], %12 {strides = array<i32>} : memref<256x128xf32, #tpu.memory_space<vmem>>, vector<256x128xf32>,
    } else {
    }
    %c0 = arith.constant 0 : index
    %c0_1 = arith.constant 0 : index
    %3 = vector.load %arg7[%c0, %c0_1] : memref<256x128xf32, #tpu.memory_space<vmem>>, vector<256x128xf32>
    %c0_2 = arith.constant 0 : index
    %c0_3 = arith.constant 0 : index
    %4 = vector.load %arg2[%c0_2, %c0_3] : memref<256x256xbf16, #tpu.memory_space<vmem>>, vector<256x256xbf16>
    %c0_4 = arith.constant 0 : index
    %c0_5 = arith.constant 0 : index
    %5 = vector.load %arg3[%c0_4, %c0_5] : memref<256x128xbf16, #tpu.memory_space<vmem>>, vector<256x128xbf16>
    %cst = arith.constant dense<0.000000e+00> : vector<256x128xf32>
    %6 = tpu.matmul %4, %5, %cst {dimension_numbers = #tpu.dot_dimension_numbers<[1], [0], [0], [1], [0, 0, 1, 1], [], []>} : vector<256x256xbf16>, vector<256x128xbf16>, vector<256x128xf32> -> vector<256x128xf32>
    %7 = arith.addf %3, %6 : vector<256x128xf32>
    %c0_6 = arith.constant 0 : index
    %c0_7 = arith.constant 0 : index
    %8 = vector.load %arg7[%c0_6, %c0_7] : memref<256x128xf32, #tpu.memory_space<vmem>>, vector<256x128xf32>
    tpu.vector_store %arg7[%c0_6, %c0_7], %7 {strides = array<i32>} : memref<256x128xf32, #tpu.memory_space<vmem>>, vector<256x128xf32>,
    %c0_i32_8 = arith.constant 0 : i32
    %9 = arith.cmpi eq, %arg1, %c0_i32_8 : i32
    %10 = arith.extui %9 : i1 to i32
    %c0_i32_9 = arith.constant 0 : i32
    %11 = arith.cmpi ne, %10, %c0_i32_9 : i32
    scf.if %11 {
      %c0_10 = arith.constant 0 : index
      %c0_11 = arith.constant 0 : index
      %12 = vector.load %arg7[%c0_10, %c0_11] : memref<256x128xf32, #tpu.memory_space<vmem>>, vector<256x128xf32>
      %cst_12 = arith.constant 0.000000e+00 : f32
      %13 = vector.broadcast %cst_12 : f32 to vector<256x128xf32>
      %14 = arith.maximumf %12, %13 : vector<256x128xf32>
      %15 = arith.truncf %14 : vector<256x128xf32> to vector<256x128xbf16>
      %c0_13 = arith.constant 0 : index
      %c0_14 = arith.constant 0 : index
      %16 = vector.load %arg4[%c0_13, %c0_14] : memref<128x128xbf16, #tpu.memory_space<vmem>>, vector<128x128xbf16>
      %cst_15 = arith.constant dense<0.000000e+00> : vector<256x128xf32>
      %17 = tpu.matmul %15, %16, %cst_15 {dimension_numbers = #tpu.dot_dimension_numbers<[1], [0], [0], [1], [0, 0, 1, 1], [], []>} : vector<256x128xbf16>, vector<128x128xbf16>, vector<256x128xf32> -> vector<256x128xf32>
      %c0_16 = arith.constant 0 : index
      %c0_17 = arith.constant 0 : index
      %18 = vector.load %arg5[%c0_16, %c0_17] : memref<1x128xf32, #tpu.memory_space<vmem>>, vector<1x128xf32>
      %19 = vector.broadcast %18 : vector<1x128xf32> to vector<256x128xf32>
      %20 = arith.addf %17, %19 : vector<256x128xf32>
      %21 = arith.truncf %20 : vector<256x128xf32> to vector<256x128xbf16>
      %c0_18 = arith.constant 0 : index
      %c0_19 = arith.constant 0 : index
      %22 = vector.load %arg6[%c0_18, %c0_19] : memref<256x128xbf16, #tpu.memory_space<vmem>>, vector<256x128xbf16>
      tpu.vector_store %arg6[%c0_18, %c0_19], %21 {strides = array<i32>} : memref<256x128xbf16, #tpu.memory_space<vmem>>, vector<256x128xbf16>,
    } else {
    }
    return
  }
  func.func @transform_0(%arg0: i32, %arg1: i32) -> (i32, i32) {
    %c0_i32 = arith.constant 0 : i32
    return %arg0, %arg1 : i32, i32
  }
  func.func @transform_1(%arg0: i32, %arg1: i32) -> (i32, i32) {
    %c0_i32 = arith.constant 0 : i32
    %c0_i32_0 = arith.constant 0 : i32
    return %arg1, %c0_i32 : i32, i32
  }
  func.func @transform_2(%arg0: i32, %arg1: i32) -> (i32, i32) {
    %c0_i32 = arith.constant 0 : i32
    %c0_i32_0 = arith.constant 0 : i32
    %c0_i32_1 = arith.constant 0 : i32
    return %c0_i32, %c0_i32_0 : i32, i32
  }
  func.func @transform_3(%arg0: i32, %arg1: i32) -> (i32, i32) {
    %c0_i32 = arith.constant 0 : i32
    %c0_i32_0 = arith.constant 0 : i32
    %c0_i32_1 = arith.constant 0 : i32
    return %c0_i32, %c0_i32_0 : i32, i32
  }
  func.func @transform_4(%arg0: i32, %arg1: i32) -> (i32, i32) {
    %c0_i32 = arith.constant 0 : i32
    %c0_i32_0 = arith.constant 0 : i32
    return %arg0, %c0_i32 : i32, i32
  }
}

</mosaic_0001>

<llo_original>
// kernel: gcn_net_forward.3
$region0: #{gcn_net_forward.3}
  #allocation0 [shape = 'u32[]', space=smem, size = 0x4, offset = 0x4, fixed_abs, tag = 'smem constant byte address 0x4 - core index']
  #allocation1 [shape = 'u32[144,128]{1,0:T(1,128)}', space=vmem, size = 0x12000, scoped, tag = 'internal scratch']
  %s0 = inlined_call_operand.hbm [shape: bf16[256,128], index: 0, kind: input, shape index: {}]
  %s1 = inlined_call_operand.hbm [shape: bf16[128,128], index: 1, kind: input, shape index: {}]
  %s2 = inlined_call_operand.hbm [shape: f32[1,128], index: 2, kind: input, shape index: {}]
  %s3 = inlined_call_operand.vmem [shape: bf16[256,128], index: 3, kind: output, shape index: {}]
  %s4 = sld [smem:[#allocation0]]
  $region34: #{gcn_net_forward.3} parent=0
    _
  %s6 = ssub.s32 1, %s4
  %s7 = scalar_select 0, %s6, %s4
  $region1: #{gcn_net_forward.3} parent=0
    #allocation2 [shape = 'u8[65536]{0}', space=vmem, size = 0x10000, scoped, tag = 'input window, operand 0, single buffered']
    #allocation3 [shape = 's32[1]{0}', space=sflag, size = 0x4, scoped, tag = 'scoped memory for gcn_net_forward.3']
    #allocation4 [shape = 'u8[32768]{0}', space=vmem, size = 0x8000, scoped, tag = 'input window, operand 1, single buffered']
    #allocation5 [shape = 's32[1]{0}', space=sflag, size = 0x4, scoped, tag = 'scoped memory for gcn_net_forward.3']
    #allocation6 [shape = 'u8[512]{0}', space=vmem, size = 0x400, scoped, tag = 'input window, operand 2, single buffered']
    %8 = vsyncpa [#allocation3], 0
    %9 = vsyncpa [#allocation5], 0
    // Predicated region
    $region2: #{gcn_net_forward.3} parent=1 // pred_check
      _
    $region3: #{gcn_net_forward.3} parent=1 // pred_check_branch
      %11 = sbr.rel (0) target = $region5
    $region4: #{gcn_net_forward.3} parent=1 // pred_region
      %s13 = ssub.s32 2048, 2048
      %14 = vsyncadd [#allocation3], %s13
      %s15 = sshll.u32 [#allocation2], 4
      %s16 = int_to_ptr.vmem [resolvable:$true] %s15
      %21 = dma.hbm_to_vmem [thread:$0]  %s0, 2048, %s16, [#allocation3], 64, 64, 4
    $region5: #{gcn_net_forward.3} parent=1 // pred_fallthru
      _
    // Predicated region
    $region6: #{gcn_net_forward.3} parent=1 // pred_check
      _
    $region7: #{gcn_net_forward.3} parent=1 // pred_check_branch
      %23 = sbr.rel (0) target = $region9
    $region8: #{gcn_net_forward.3} parent=1 // pred_region
      %s25 = ssub.s32 1024, 1024
      %26 = vsyncadd [#allocation5], %s25
      %s27 = sshll.u32 [#allocation4], 4
      %s28 = int_to_ptr.vmem [resolvable:$true] %s27
      %33 = dma.hbm_to_vmem [thread:$0]  %s1, 1024, %s28, [#allocation5], 64, 64, 4
    $region9: #{gcn_net_forward.3} parent=1 // pred_fallthru
      _
    // Predicated region
    $region10: #{gcn_net_forward.3} parent=1 // pred_check
      _
    $region11: #{gcn_net_forward.3} parent=1 // pred_check_branch
      %35 = sbr.rel (0) target = $region13
    $region12: #{gcn_net_forward.3} parent=1 // pred_region
      %s37 = ssub.s32 16, 16
      %38 = vsyncadd [#allocation5], %s37
      %s40 = sshll.u32 [#allocation6], 4
      %s41 = int_to_ptr.vmem [resolvable:$true] %s40
      %43 = dma.hbm_to_vmem [thread:$0]  %s2, 16, %s41, [#allocation5]
    $region13: #{gcn_net_forward.3} parent=1 // pred_fallthru
      _
    // Predicated region
    $region14: #{gcn_net_forward.3} parent=1 // pred_check
      _
    $region15: #{gcn_net_forward.3} parent=1 // pred_check_branch
      %45 = sbr.rel (0) target = $region17
    $region16: #{gcn_net_forward.3} parent=1 // pred_region
      %46 = dma.done [#allocation3], 2048
    $region17: #{gcn_net_forward.3} parent=1 // pred_fallthru
      _
    // Predicated region
    $region18: #{gcn_net_forward.3} parent=1 // pred_check
      _
    $region19: #{gcn_net_forward.3} parent=1 // pred_check_branch
      %48 = sbr.rel (0) target = $region21
    $region20: #{gcn_net_forward.3} parent=1 // pred_region
      %49 = dma.done [#allocation5], 1024
    $region21: #{gcn_net_forward.3} parent=1 // pred_fallthru
      _
    // Predicated region
    $region22: #{gcn_net_forward.3} parent=1 // pred_check
      _
    $region23: #{gcn_net_forward.3} parent=1 // pred_check_branch
      %51 = sbr.rel (0) target = $region25
    $region24: #{gcn_net_forward.3} parent=1 // pred_region
      %52 = dma.done [#allocation5], 16
    $region25: #{gcn_net_forward.3} parent=1 // pred_fallthru
      _
    %v54 = vld [vmem:[#allocation2] sm:$0xf]
    %v55 = vld [vmem:[#allocation2 + $0x4] sm:$0xf]
    %v56 = vld [vmem:[#allocation2 + $0x8] sm:$0xf]
    %v57 = vld [vmem:[#allocation2 + $0xc] sm:$0xf]
    %v58 = vld [vmem:[#allocation2 + $0x10] sm:$0xf]
    %v59 = vld [vmem:[#allocation2 + $0x14] sm:$0xf]
    %v60 = vld [vmem:[#allocation2 + $0x18] sm:$0xf]
    %v61 = vld [vmem:[#allocation2 + $0x1c] sm:$0xf]
    %v62 = vld [vmem:[#allocation2 + $0x20] sm:$0xf]
    %v63 = vld [vmem:[#allocation2 + $0x24] sm:$0xf]
    %v64 = vld [vmem:[#allocation2 + $0x28] sm:$0xf]
    %v65 = vld [vmem:[#allocation2 + $0x2c] sm:$0xf]
    %v66 = vld [vmem:[#allocation2 + $0x30] sm:$0xf]
    %v67 = vld [vmem:[#allocation2 + $0x34] sm:$0xf]
    %v68 = vld [vmem:[#allocation2 + $0x38] sm:$0xf]
    %v69 = vld [vmem:[#allocation2 + $0x3c] sm:$0xf]
    %v70 = vld [vmem:[#allocation2 + $0x40] sm:$0xf]
    %v71 = vld [vmem:[#allocation2 + $0x44] sm:$0xf]
    %v72 = vld [vmem:[#allocation2 + $0x48] sm:$0xf]
    %v73 = vld [vmem:[#allocation2 + $0x4c] sm:$0xf]
    %v74 = vld [vmem:[#allocation2 + $0x50] sm:$0xf]
    %v75 = vld [vmem:[#allocation2 + $0x54] sm:$0xf]
    %v76 = vld [vmem:[#allocation2 + $0x58] sm:$0xf]
    %v77 = vld [vmem:[#allocation2 + $0x5c] sm:$0xf]
    %v78 = vld [vmem:[#allocation2 + $0x60] sm:$0xf]
    %v79 = vld [vmem:[#allocation2 + $0x64] sm:$0xf]
    %v80 = vld [vmem:[#allocation2 + $0x68] sm:$0xf]
    %v81 = vld [vmem:[#allocation2 + $0x6c] sm:$0xf]
    %v82 = vld [vmem:[#allocation2 + $0x70] sm:$0xf]
    %v83 = vld [vmem:[#allocation2 + $0x74] sm:$0xf]
    %v84 = vld [vmem:[#allocation2 + $0x78] sm:$0xf]
    %v85 = vld [vmem:[#allocation2 + $0x7c] sm:$0xf]
    %v86 = vld [vmem:[#allocation4] sm:$0xf]
    %v87 = vld [vmem:[#allocation4 + $0x4] sm:$0xf]
    %v88 = vld [vmem:[#allocation4 + $0x8] sm:$0xf]
    %v89 = vld [vmem:[#allocation4 + $0xc] sm:$0xf]
    %v90 = vld [vmem:[#allocation4 + $0x10] sm:$0xf]
    %v91 = vld [vmem:[#allocation4 + $0x14] sm:$0xf]
    %v92 = vld [vmem:[#allocation4 + $0x18] sm:$0xf]
    %v93 = vld [vmem:[#allocation4 + $0x1c] sm:$0xf]
    %v94 = vld [vmem:[#allocation4 + $0x20] sm:$0xf]
    %v95 = vld [vmem:[#allocation4 + $0x24] sm:$0xf]
    %v96 = vld [vmem:[#allocation4 + $0x28] sm:$0xf]
    %v97 = vld [vmem:[#allocation4 + $0x2c] sm:$0xf]
    %v98 = vld [vmem:[#allocation4 + $0x30] sm:$0xf]
    %v99 = vld [vmem:[#allocation4 + $0x34] sm:$0xf]
    %v100 = vld [vmem:[#allocation4 + $0x38] sm:$0xf]
    %v101 = vld [vmem:[#allocation4 + $0x3c] sm:$0xf]
    %v102 = vld [vmem:[#allocation6] sm:$0x1]
    %v104 = vlaneseq
    %v105 = vshrl.u32 %v104, 7
    %v106 = vsub.s32 0, %v105
    %v107 = vrot.slane %v102, %v106
    %v141 = vunpack.c.l.b16 %v54
    %v142 = vunpack.c.l.b16 %v55
    %v143 = vunpack.c.l.b16 %v56
    %v144 = vunpack.c.l.b16 %v57
    %v145 = vunpack.c.l.b16 %v58
    %v146 = vunpack.c.l.b16 %v59
    %v147 = vunpack.c.l.b16 %v60
    %v148 = vunpack.c.l.b16 %v61
    %v149 = vunpack.c.l.b16 %v62
    %v150 = vunpack.c.l.b16 %v63
    %v151 = vunpack.c.l.b16 %v64
    %v152 = vunpack.c.l.b16 %v65
    %v153 = vunpack.c.l.b16 %v66
    %v154 = vunpack.c.l.b16 %v67
    %v155 = vunpack.c.l.b16 %v68
    %v156 = vunpack.c.l.b16 %v69
    %v157 = vunpack.c.l.b16 %v70
    %v158 = vunpack.c.l.b16 %v71
    %v159 = vunpack.c.l.b16 %v72
    %v160 = vunpack.c.l.b16 %v73
    %v161 = vunpack.c.l.b16 %v74
    %v162 = vunpack.c.l.b16 %v75
    %v163 = vunpack.c.l.b16 %v76
    %v164 = vunpack.c.l.b16 %v77
    %v165 = vunpack.c.l.b16 %v78
    %v166 = vunpack.c.l.b16 %v79
    %v167 = vunpack.c.l.b16 %v80
    %v168 = vunpack.c.l.b16 %v81
    %v169 = vunpack.c.l.b16 %v82
    %v170 = vunpack.c.l.b16 %v83
    %v171 = vunpack.c.l.b16 %v84
    %v172 = vunpack.c.l.b16 %v85
    %v173 = vpack.c.b16 %v142, %v141
    %v174 = vpack.c.b16 %v144, %v143
    %v175 = vpack.c.b16 %v146, %v145
    %v176 = vpack.c.b16 %v148, %v147
    %v177 = vpack.c.b16 %v150, %v149
    %v178 = vpack.c.b16 %v152, %v151
    %v179 = vpack.c.b16 %v154, %v153
    %v180 = vpack.c.b16 %v156, %v155
    %v181 = vpack.c.b16 %v158, %v157
    %v182 = vpack.c.b16 %v160, %v159
    %v183 = vpack.c.b16 %v162, %v161
    %v184 = vpack.c.b16 %v164, %v163
    %v185 = vpack.c.b16 %v166, %v165
    %v186 = vpack.c.b16 %v168, %v167
    %v187 = vpack.c.b16 %v170, %v169
    %v188 = vpack.c.b16 %v172, %v171
    %v221 = vunpack.c.l.b16 %v86
    %v222 = vunpack.c.l.b16 %v87
    %v223 = vunpack.c.l.b16 %v88
    %v224 = vunpack.c.l.b16 %v89
    %v225 = vunpack.c.l.b16 %v90
    %v226 = vunpack.c.l.b16 %v91
    %v227 = vunpack.c.l.b16 %v92
    %v228 = vunpack.c.l.b16 %v93
    %v229 = vunpack.c.l.b16 %v94
    %v230 = vunpack.c.l.b16 %v95
    %v231 = vunpack.c.l.b16 %v96
    %v232 = vunpack.c.l.b16 %v97
    %v233 = vunpack.c.l.b16 %v98
    %v234 = vunpack.c.l.b16 %v99
    %v235 = vunpack.c.l.b16 %v100
    %v236 = vunpack.c.l.b16 %v101
    %v237 = vpack.c.b16 %v222, %v221
    %v238 = vpack.c.b16 %v224, %v223
    %v239 = vpack.c.b16 %v226, %v225
    %v240 = vpack.c.b16 %v228, %v227
    %v241 = vpack.c.b16 %v230, %v229
    %v242 = vpack.c.b16 %v232, %v231
    %v243 = vpack.c.b16 %v234, %v233
    %v244 = vpack.c.b16 %v236, %v235
    %253 = vmatprep.subr.bf16.mxu0 0
    %254 = vmatpush1.bf16.msra.mxu0 %v237
    %255 = vmatprep.subr.bf16.mxu0 0
    %256 = vmatpush1.bf16.msra.mxu0 %v238
    %257 = vmatprep.subr.bf16.mxu0 0
    %258 = vmatpush1.bf16.msra.mxu0 %v239
    %259 = vmatprep.subr.bf16.mxu0 0
    %260 = vmatpush1.bf16.msra.mxu0 %v240
    %261 = vmatprep.subr.bf16.mxu0 0
    %262 = vmatpush1.bf16.msra.mxu0 %v241
    %263 = vmatprep.subr.bf16.mxu0 0
    %264 = vmatpush1.bf16.msra.mxu0 %v242
    %265 = vmatprep.subr.bf16.mxu0 0
    %266 = vmatpush1.bf16.msra.mxu0 %v243
    %267 = vmatprep.subr.bf16.mxu0 0
    %268 = vmatpush1.bf16.msra.mxu0 %v244
    %269 = vmatprep.subr.bf16.mxu0 0
    %270 = vmatpush1.bf16.msra.mxu0 0
    %271 = vmatprep.subr.bf16.mxu0 0
    %272 = vmatpush1.bf16.msra.mxu0 0
    %273 = vmatprep.subr.bf16.mxu0 0
    %274 = vmatpush1.bf16.msra.mxu0 0
    %275 = vmatprep.subr.bf16.mxu0 0
    %276 = vmatpush1.bf16.msra.mxu0 0
    %277 = vmatprep.subr.bf16.mxu0 0
    %278 = vmatpush1.bf16.msra.mxu0 0
    %279 = vmatprep.subr.bf16.mxu0 0
    %280 = vmatpush1.bf16.msra.mxu0 0
    %281 = vmatprep.subr.bf16.mxu0 0
    %282 = vmatpush1.bf16.msra.mxu0 0
    %283 = vmatprep.subr.bf16.mxu0 0
    %284 = vmatpush1.bf16.msra.mxu0 0
    %285 = vmatprep.mubr.bf16.mxu0 0
    %286 = vmatmul.mubr.bf16.gmra.mrb[0].mxu0 %v173
    %v287 = vpop.f32.mrb[0].mxu0
    %v288 = vadd.f32 %v107, %v287
    %v289 = vpop.f32.mrb[0].mxu0
    %v290 = vpop.f32.mrb[0].mxu0
    %v291 = vadd.f32 %v107, %v290
    %v292 = vpop.f32.mrb[0].mxu0
    %293 = vmatprep.mubr.bf16.mxu0 0
    %294 = vmatmul.mubr.bf16.gmra.mrb[0].mxu0 %v174
    %v295 = vpop.f32.mrb[0].mxu0
    %v296 = vadd.f32 %v107, %v295
    %v297 = vpop.f32.mrb[0].mxu0
    %v298 = vpop.f32.mrb[0].mxu0
    %v299 = vadd.f32 %v107, %v298
    %v300 = vpop.f32.mrb[0].mxu0
    %301 = vmatprep.mubr.bf16.mxu0 0
    %302 = vmatmul.mubr.bf16.gmra.mrb[0].mxu0 %v175
    %v303 = vpop.f32.mrb[0].mxu0
    %v304 = vadd.f32 %v107, %v303
    %v305 = vpop.f32.mrb[0].mxu0
    %v306 = vpop.f32.mrb[0].mxu0
    %v307 = vadd.f32 %v107, %v306
    %v308 = vpop.f32.mrb[0].mxu0
    %309 = vmatprep.mubr.bf16.mxu0 0
    %310 = vmatmul.mubr.bf16.gmra.mrb[0].mxu0 %v176
    %v311 = vpop.f32.mrb[0].mxu0
    %v312 = vadd.f32 %v107, %v311
    %v313 = vpop.f32.mrb[0].mxu0
    %v314 = vpop.f32.mrb[0].mxu0
    %v315 = vadd.f32 %v107, %v314
    %v316 = vpop.f32.mrb[0].mxu0
    %317 = vmatprep.mubr.bf16.mxu0 0
    %318 = vmatmul.mubr.bf16.gmra.mrb[0].mxu0 %v177
    %v319 = vpop.f32.mrb[0].mxu0
    %v320 = vadd.f32 %v107, %v319
    %v321 = vpop.f32.mrb[0].mxu0
    %v322 = vpop.f32.mrb[0].mxu0
    %v323 = vadd.f32 %v107, %v322
    %v324 = vpop.f32.mrb[0].mxu0
    %325 = vmatprep.mubr.bf16.mxu0 0
    %326 = vmatmul.mubr.bf16.gmra.mrb[0].mxu0 %v178
    %v327 = vpop.f32.mrb[0].mxu0
    %v328 = vadd.f32 %v107, %v327
    %v329 = vpop.f32.mrb[0].mxu0
    %v330 = vpop.f32.mrb[0].mxu0
    %v331 = vadd.f32 %v107, %v330
    %v332 = vpop.f32.mrb[0].mxu0
    %333 = vmatprep.mubr.bf16.mxu0 0
    %334 = vmatmul.mubr.bf16.gmra.mrb[0].mxu0 %v179
    %v335 = vpop.f32.mrb[0].mxu0
    %v336 = vadd.f32 %v107, %v335
    %v337 = vpop.f32.mrb[0].mxu0
    %v338 = vpop.f32.mrb[0].mxu0
    %v339 = vadd.f32 %v107, %v338
    %v340 = vpop.f32.mrb[0].mxu0
    %341 = vmatprep.mubr.bf16.mxu0 0
    %342 = vmatmul.mubr.bf16.gmra.mrb[0].mxu0 %v180
    %v343 = vpop.f32.mrb[0].mxu0
    %v344 = vadd.f32 %v107, %v343
    %v345 = vpop.f32.mrb[0].mxu0
    %v346 = vpop.f32.mrb[0].mxu0
    %v347 = vadd.f32 %v107, %v346
    %v348 = vpop.f32.mrb[0].mxu0
    %349 = vmatprep.mubr.bf16.mxu0 0
    %350 = vmatmul.mubr.bf16.gmra.mrb[0].mxu0 %v181
    %v351 = vpop.f32.mrb[0].mxu0
    %v352 = vadd.f32 %v107, %v351
    %v353 = vpop.f32.mrb[0].mxu0
    %v354 = vpop.f32.mrb[0].mxu0
    %v355 = vadd.f32 %v107, %v354
    %v356 = vpop.f32.mrb[0].mxu0
    %357 = vmatprep.mubr.bf16.mxu0 0
    %358 = vmatmul.mubr.bf16.gmra.mrb[0].mxu0 %v182
    %v359 = vpop.f32.mrb[0].mxu0
    %v360 = vadd.f32 %v107, %v359
    %v361 = vpop.f32.mrb[0].mxu0
    %v362 = vpop.f32.mrb[0].mxu0
    %v363 = vadd.f32 %v107, %v362
    %v364 = vpop.f32.mrb[0].mxu0
    %365 = vmatprep.mubr.bf16.mxu0 0
    %366 = vmatmul.mubr.bf16.gmra.mrb[0].mxu0 %v183
    %v367 = vpop.f32.mrb[0].mxu0
    %v368 = vadd.f32 %v107, %v367
    %v369 = vpop.f32.mrb[0].mxu0
    %v370 = vpop.f32.mrb[0].mxu0
    %v371 = vadd.f32 %v107, %v370
    %v372 = vpop.f32.mrb[0].mxu0
    %373 = vmatprep.mubr.bf16.mxu0 0
    %374 = vmatmul.mubr.bf16.gmra.mrb[0].mxu0 %v184
    %v375 = vpop.f32.mrb[0].mxu0
    %v376 = vadd.f32 %v107, %v375
    %v377 = vpop.f32.mrb[0].mxu0
    %v378 = vpop.f32.mrb[0].mxu0
    %v379 = vadd.f32 %v107, %v378
    %v380 = vpop.f32.mrb[0].mxu0
    %381 = vmatprep.mubr.bf16.mxu0 0
    %382 = vmatmul.mubr.bf16.gmra.mrb[0].mxu0 %v185
    %v383 = vpop.f32.mrb[0].mxu0
    %v384 = vadd.f32 %v107, %v383
    %v385 = vpop.f32.mrb[0].mxu0
    %v386 = vpop.f32.mrb[0].mxu0
    %v387 = vadd.f32 %v107, %v386
    %v388 = vpop.f32.mrb[0].mxu0
    %389 = vmatprep.mubr.bf16.mxu0 0
    %390 = vmatmul.mubr.bf16.gmra.mrb[0].mxu0 %v186
    %v391 = vpop.f32.mrb[0].mxu0
    %v392 = vadd.f32 %v107, %v391
    %v393 = vpop.f32.mrb[0].mxu0
    %v394 = vpop.f32.mrb[0].mxu0
    %v395 = vadd.f32 %v107, %v394
    %v396 = vpop.f32.mrb[0].mxu0
    %397 = vmatprep.mubr.bf16.mxu0 0
    %398 = vmatmul.mubr.bf16.gmra.mrb[0].mxu0 %v187
    %v399 = vpop.f32.mrb[0].mxu0
    %v400 = vadd.f32 %v107, %v399
    %v401 = vpop.f32.mrb[0].mxu0
    %v402 = vpop.f32.mrb[0].mxu0
    %v403 = vadd.f32 %v107, %v402
    %v404 = vpop.f32.mrb[0].mxu0
    %405 = vmatprep.mubr.bf16.mxu0 0
    %406 = vmatmul.mubr.bf16.gmra.mrb[0].mxu0 %v188
    %v407 = vpop.f32.mrb[0].mxu0
    %v408 = vadd.f32 %v107, %v407
    %v409 = vpop.f32.mrb[0].mxu0
    %v410 = vpop.f32.mrb[0].mxu0
    %v411 = vadd.f32 %v107, %v410
    %v412 = vpop.f32.mrb[0].mxu0
    %413 = vdwg.mxu0
    %v414 = vpack.c.bf16 %v291, %v288
    %v415 = vpack.c.bf16 %v299, %v296
    %v416 = vpack.c.bf16 %v307, %v304
    %v417 = vpack.c.bf16 %v315, %v312
    %v418 = vpack.c.bf16 %v323, %v320
    %v419 = vpack.c.bf16 %v331, %v328
    %v420 = vpack.c.bf16 %v339, %v336
    %v421 = vpack.c.bf16 %v347, %v344
    %v422 = vpack.c.bf16 %v355, %v352
    %v423 = vpack.c.bf16 %v363, %v360
    %v424 = vpack.c.bf16 %v371, %v368
    %v425 = vpack.c.bf16 %v379, %v376
    %v426 = vpack.c.bf16 %v387, %v384
    %v427 = vpack.c.bf16 %v395, %v392
    %v428 = vpack.c.bf16 %v403, %v400
    %v429 = vpack.c.bf16 %v411, %v408
    %v446 = vunpack.c.l.b16 %v414
    %v447 = vunpack.c.h.b16 %v414
    %v448 = vunpack.c.l.b16 %v415
    %v449 = vunpack.c.h.b16 %v415
    %v450 = vunpack.c.l.b16 %v416
    %v451 = vunpack.c.h.b16 %v416
    %v452 = vunpack.c.l.b16 %v417
    %v453 = vunpack.c.h.b16 %v417
    %v454 = vunpack.c.l.b16 %v418
    %v455 = vunpack.c.h.b16 %v418
    %v456 = vunpack.c.l.b16 %v419
    %v457 = vunpack.c.h.b16 %v419
    %v458 = vunpack.c.l.b16 %v420
    %v459 = vunpack.c.h.b16 %v420
    %v460 = vunpack.c.l.b16 %v421
    %v461 = vunpack.c.h.b16 %v421
    %v462 = vunpack.c.l.b16 %v422
    %v463 = vunpack.c.h.b16 %v422
    %v464 = vunpack.c.l.b16 %v423
    %v465 = vunpack.c.h.b16 %v423
    %v466 = vunpack.c.l.b16 %v424
    %v467 = vunpack.c.h.b16 %v424
    %v468 = vunpack.c.l.b16 %v425
    %v469 = vunpack.c.h.b16 %v425
    %v470 = vunpack.c.l.b16 %v426
    %v471 = vunpack.c.h.b16 %v426
    %v472 = vunpack.c.l.b16 %v427
    %v473 = vunpack.c.h.b16 %v427
    %v474 = vunpack.c.l.b16 %v428
    %v475 = vunpack.c.h.b16 %v428
    %v476 = vunpack.c.l.b16 %v429
    %v477 = vunpack.c.h.b16 %v429
    %v478 = vpack.c.b16 %v446, %v446
    %v479 = vpack.c.b16 %v447, %v447
    %v480 = vpack.c.b16 %v448, %v448
    %v481 = vpack.c.b16 %v449, %v449
    %v482 = vpack.c.b16 %v450, %v450
    %v483 = vpack.c.b16 %v451, %v451
    %v484 = vpack.c.b16 %v452, %v452
    %v485 = vpack.c.b16 %v453, %v453
    %v486 = vpack.c.b16 %v454, %v454
    %v487 = vpack.c.b16 %v455, %v455
    %v488 = vpack.c.b16 %v456, %v456
    %v489 = vpack.c.b16 %v457, %v457
    %v490 = vpack.c.b16 %v458, %v458
    %v491 = vpack.c.b16 %v459, %v459
    %v492 = vpack.c.b16 %v460, %v460
    %v493 = vpack.c.b16 %v461, %v461
    %v494 = vpack.c.b16 %v462, %v462
    %v495 = vpack.c.b16 %v463, %v463
    %v496 = vpack.c.b16 %v464, %v464
    %v497 = vpack.c.b16 %v465, %v465
    %v498 = vpack.c.b16 %v466, %v466
    %v499 = vpack.c.b16 %v467, %v467
    %v500 = vpack.c.b16 %v468, %v468
    %v501 = vpack.c.b16 %v469, %v469
    %v502 = vpack.c.b16 %v470, %v470
    %v503 = vpack.c.b16 %v471, %v471
    %v504 = vpack.c.b16 %v472, %v472
    %v505 = vpack.c.b16 %v473, %v473
    %v506 = vpack.c.b16 %v474, %v474
    %v507 = vpack.c.b16 %v475, %v475
    %v508 = vpack.c.b16 %v476, %v476
    %v509 = vpack.c.b16 %v477, %v477
    %542 = vst [vmem:[%s3] sm:$0xf] %v478
    %543 = vst [vmem:[%s3 + $0x4] sm:$0xf] %v479
    %544 = vst [vmem:[%s3 + $0x8] sm:$0xf] %v480
    %545 = vst [vmem:[%s3 + $0xc] sm:$0xf] %v481
    %546 = vst [vmem:[%s3 + $0x10] sm:$0xf] %v482
    %547 = vst [vmem:[%s3 + $0x14] sm:$0xf] %v483
    %548 = vst [vmem:[%s3 + $0x18] sm:$0xf] %v484
    %549 = vst [vmem:[%s3 + $0x1c] sm:$0xf] %v485
    %550 = vst [vmem:[%s3 + $0x20] sm:$0xf] %v486
    %551 = vst [vmem:[%s3 + $0x24] sm:$0xf] %v487
    %552 = vst [vmem:[%s3 + $0x28] sm:$0xf] %v488
    %553 = vst [vmem:[%s3 + $0x2c] sm:$0xf] %v489
    %554 = vst [vmem:[%s3 + $0x30] sm:$0xf] %v490
    %555 = vst [vmem:[%s3 + $0x34] sm:$0xf] %v491
    %556 = vst [vmem:[%s3 + $0x38] sm:$0xf] %v492
    %557 = vst [vmem:[%s3 + $0x3c] sm:$0xf] %v493
    %558 = vst [vmem:[%s3 + $0x40] sm:$0xf] %v494
    %559 = vst [vmem:[%s3 + $0x44] sm:$0xf] %v495
    %560 = vst [vmem:[%s3 + $0x48] sm:$0xf] %v496
    %561 = vst [vmem:[%s3 + $0x4c] sm:$0xf] %v497
    %562 = vst [vmem:[%s3 + $0x50] sm:$0xf] %v498
    %563 = vst [vmem:[%s3 + $0x54] sm:$0xf] %v499
    %564 = vst [vmem:[%s3 + $0x58] sm:$0xf] %v500
    %565 = vst [vmem:[%s3 + $0x5c] sm:$0xf] %v501
    %566 = vst [vmem:[%s3 + $0x60] sm:$0xf] %v502
    %567 = vst [vmem:[%s3 + $0x64] sm:$0xf] %v503
    %568 = vst [vmem:[%s3 + $0x68] sm:$0xf] %v504
    %569 = vst [vmem:[%s3 + $0x6c] sm:$0xf] %v505
    %570 = vst [vmem:[%s3 + $0x70] sm:$0xf] %v506
    %571 = vst [vmem:[%s3 + $0x74] sm:$0xf] %v507
    %572 = vst [vmem:[%s3 + $0x78] sm:$0xf] %v508
    %573 = vst [vmem:[%s3 + $0x7c] sm:$0xf] %v509
    // Predicated region
    $region26: #{gcn_net_forward.3} parent=1 // pred_check
      _
    $region27: #{gcn_net_forward.3} parent=1 // pred_check_branch
      %575 = sbr.rel (0) target = $region29
    $region28: #{gcn_net_forward.3} parent=1 // pred_region
      _
    $region29: #{gcn_net_forward.3} parent=1 // pred_fallthru
      _
    // Predicated region
    $region30: #{gcn_net_forward.3} parent=1 // pred_check
      _
    $region31: #{gcn_net_forward.3} parent=1 // pred_check_branch
      %577 = sbr.rel (0) target = $region33
    $region32: #{gcn_net_forward.3} parent=1 // pred_region
      _
    $region33: #{gcn_net_forward.3} parent=1 // pred_fallthru
      _
    %578 = vsyncpa [#allocation3], 1
    %579 = vsyncpa [#allocation5], 1

// kernel: gcn_net_forward.5
$region0: #{gcn_net_forward.5}
  #allocation0 [shape = 'u32[]', space=smem, size = 0x4, offset = 0x4, fixed_abs, tag = 'smem constant byte address 0x4 - core index']
  #allocation1 [shape = 'u32[144,128]{1,0:T(1,128)}', space=vmem, size = 0x12000, scoped, tag = 'internal scratch']
  #allocation2 [shape = 'f32[256,128]{1,0:T(8,128)}', space=vmem, size = 0x20000, scoped, tag = 'scratch operand']
  %s0 = inlined_call_operand.vmem [shape: bf16[256,256], index: 0, kind: input, shape index: {}]
  %s1 = inlined_call_operand.vmem [shape: bf16[256,128], index: 1, kind: input, shape index: {}]
  %s2 = inlined_call_operand.hbm [shape: f32[256,128], index: 2, kind: output, shape index: {}]
  %s3 = sld [smem:[#allocation0]]
  $region26: #{gcn_net_forward.5} parent=0
    _
  %s5 = ssub.s32 1, %s3
  %s6 = scalar_select 0, %s5, %s3
  $region1: #{gcn_net_forward.5} parent=0
    #allocation3 [shape = 'u8[131072]{0}', space=vmem, size = 0x20000, scoped, tag = 'output window, operand 0, single buffered']
    #allocation4 [shape = 's32[1]{0}', space=sflag, size = 0x4, scoped, tag = 'scoped memory for gcn_net_forward.5']
    %7 = vsyncpa [#allocation4], 0
    // Predicated region
    $region2: #{gcn_net_forward.5} parent=1 // pred_check
      _
    $region3: #{gcn_net_forward.5} parent=1 // pred_check_branch
      %9 = sbr.rel (0) target = $region5
    $region4: #{gcn_net_forward.5} parent=1 // pred_region
      _
    $region5: #{gcn_net_forward.5} parent=1 // pred_fallthru
      _
    // Predicated region
    $region6: #{gcn_net_forward.5} parent=1 // pred_check
      _
    $region7: #{gcn_net_forward.5} parent=1 // pred_check_branch
      %11 = sbr.rel (0) target = $region9
    $region8: #{gcn_net_forward.5} parent=1 // pred_region
      _
    $region9: #{gcn_net_forward.5} parent=1 // pred_fallthru
      _
    %p13 = scmp.eq.s32.totalorder 0, 0
    // Predicated region
    $region10: #{gcn_net_forward.5} parent=1 // pred_check
      %p14 = pneg %p13
    $region11: #{gcn_net_forward.5} parent=1 // pred_check_branch
      %16 = sbr.rel (%p14) target = $region13
    $region12: #{gcn_net_forward.5} parent=1 // pred_region
      %17 = vst [vmem:[#allocation2] sm:$0xff] 0.0
      %18 = vst [vmem:[#allocation2 + $0x8] sm:$0xff] 0.0
      %19 = vst [vmem:[#allocation2 + $0x10] sm:$0xff] 0.0
      %20 = vst [vmem:[#allocation2 + $0x18] sm:$0xff] 0.0
      %21 = vst [vmem:[#allocation2 + $0x20] sm:$0xff] 0.0
      %22 = vst [vmem:[#allocation2 + $0x28] sm:$0xff] 0.0
      %23 = vst [vmem:[#allocation2 + $0x30] sm:$0xff] 0.0
      %24 = vst [vmem:[#allocation2 + $0x38] sm:$0xff] 0.0
      %25 = vst [vmem:[#allocation2 + $0x40] sm:$0xff] 0.0
      %26 = vst [vmem:[#allocation2 + $0x48] sm:$0xff] 0.0
      %27 = vst [vmem:[#allocation2 + $0x50] sm:$0xff] 0.0
      %28 = vst [vmem:[#allocation2 + $0x58] sm:$0xff] 0.0
      %29 = vst [vmem:[#allocation2 + $0x60] sm:$0xff] 0.0
      %30 = vst [vmem:[#allocation2 + $0x68] sm:$0xff] 0.0
      %31 = vst [vmem:[#allocation2 + $0x70] sm:$0xff] 0.0
      %32 = vst [vmem:[#allocation2 + $0x78] sm:$0xff] 0.0
      %33 = vst [vmem:[#allocation2 + $0x80] sm:$0xff] 0.0
      %34 = vst [vmem:[#allocation2 + $0x88] sm:$0xff] 0.0
      %35 = vst [vmem:[#allocation2 + $0x90] sm:$0xff] 0.0
      %36 = vst [vmem:[#allocation2 + $0x98] sm:$0xff] 0.0
      %37 = vst [vmem:[#allocation2 + $0xa0] sm:$0xff] 0.0
      %38 = vst [vmem:[#allocation2 + $0xa8] sm:$0xff] 0.0
      %39 = vst [vmem:[#allocation2 + $0xb0] sm:$0xff] 0.0
      %40 = vst [vmem:[#allocation2 + $0xb8] sm:$0xff] 0.0
      %41 = vst [vmem:[#allocation2 + $0xc0] sm:$0xff] 0.0
      %42 = vst [vmem:[#allocation2 + $0xc8] sm:$0xff] 0.0
      %43 = vst [vmem:[#allocation2 + $0xd0] sm:$0xff] 0.0
      %44 = vst [vmem:[#allocation2 + $0xd8] sm:$0xff] 0.0
      %45 = vst [vmem:[#allocation2 + $0xe0] sm:$0xff] 0.0
      %46 = vst [vmem:[#allocation2 + $0xe8] sm:$0xff] 0.0
      %47 = vst [vmem:[#allocation2 + $0xf0] sm:$0xff] 0.0
      %48 = vst [vmem:[#allocation2 + $0xf8] sm:$0xff] 0.0
    $region13: #{gcn_net_forward.5} parent=1 // pred_fallthru
      _
    %v49 = vld [vmem:[#allocation2] sm:$0xff]
    %v50 = vld [vmem:[#allocation2 + $0x8] sm:$0xff]
    %v51 = vld [vmem:[#allocation2 + $0x10] sm:$0xff]
    %v52 = vld [vmem:[#allocation2 + $0x18] sm:$0xff]
    %v53 = vld [vmem:[#allocation2 + $0x20] sm:$0xff]
    %v54 = vld [vmem:[#allocation2 + $0x28] sm:$0xff]
    %v55 = vld [vmem:[#allocation2 + $0x30] sm:$0xff]
    %v56 = vld [vmem:[#allocation2 + $0x38] sm:$0xff]
    %v57 = vld [vmem:[#allocation2 + $0x40] sm:$0xff]
    %v58 = vld [vmem:[#allocation2 + $0x48] sm:$0xff]
    %v59 = vld [vmem:[#allocation2 + $0x50] sm:$0xff]
    %v60 = vld [vmem:[#allocation2 + $0x58] sm:$0xff]
    %v61 = vld [vmem:[#allocation2 + $0x60] sm:$0xff]
    %v62 = vld [vmem:[#allocation2 + $0x68] sm:$0xff]
    %v63 = vld [vmem:[#allocation2 + $0x70] sm:$0xff]
    %v64 = vld [vmem:[#allocation2 + $0x78] sm:$0xff]
    %v65 = vld [vmem:[#allocation2 + $0x80] sm:$0xff]
    %v66 = vld [vmem:[#allocation2 + $0x88] sm:$0xff]
    %v67 = vld [vmem:[#allocation2 + $0x90] sm:$0xff]
    %v68 = vld [vmem:[#allocation2 + $0x98] sm:$0xff]
    %v69 = vld [vmem:[#allocation2 + $0xa0] sm:$0xff]
    %v70 = vld [vmem:[#allocation2 + $0xa8] sm:$0xff]
    %v71 = vld [vmem:[#allocation2 + $0xb0] sm:$0xff]
    %v72 = vld [vmem:[#allocation2 + $0xb8] sm:$0xff]
    %v73 = vld [vmem:[#allocation2 + $0xc0] sm:$0xff]
    %v74 = vld [vmem:[#allocation2 + $0xc8] sm:$0xff]
    %v75 = vld [vmem:[#allocation2 + $0xd0] sm:$0xff]
    %v76 = vld [vmem:[#allocation2 + $0xd8] sm:$0xff]
    %v77 = vld [vmem:[#allocation2 + $0xe0] sm:$0xff]
    %v78 = vld [vmem:[#allocation2 + $0xe8] sm:$0xff]
    %v79 = vld [vmem:[#allocation2 + $0xf0] sm:$0xff]
    %v80 = vld [vmem:[#allocation2 + $0xf8] sm:$0xff]
    %v81 = vld [vmem:[%s0] sm:$0xff]
    %v82 = vld [vmem:[%s0 + $0x8] sm:$0xff]
    %v83 = vld [vmem:[%s0 + $0x10] sm:$0xff]
    %v84 = vld [vmem:[%s0 + $0x18] sm:$0xff]
    %v85 = vld [vmem:[%s0 + $0x20] sm:$0xff]
    %v86 = vld [vmem:[%s0 + $0x28] sm:$0xff]
    %v87 = vld [vmem:[%s0 + $0x30] sm:$0xff]
    %v88 = vld [vmem:[%s0 + $0x38] sm:$0xff]
    %v89 = vld [vmem:[%s0 + $0x40] sm:$0xff]
    %v90 = vld [vmem:[%s0 + $0x48] sm:$0xff]
    %v91 = vld [vmem:[%s0 + $0x50] sm:$0xff]
    %v92 = vld [vmem:[%s0 + $0x58] sm:$0xff]
    %v93 = vld [vmem:[%s0 + $0x60] sm:$0xff]
    %v94 = vld [vmem:[%s0 + $0x68] sm:$0xff]
    %v95 = vld [vmem:[%s0 + $0x70] sm:$0xff]
    %v96 = vld [vmem:[%s0 + $0x78] sm:$0xff]
    %v97 = vld [vmem:[%s0 + $0x80] sm:$0xff]
    %v98 = vld [vmem:[%s0 + $0x88] sm:$0xff]
    %v99 = vld [vmem:[%s0 + $0x90] sm:$0xff]
    %v100 = vld [vmem:[%s0 + $0x98] sm:$0xff]
    %v101 = vld [vmem:[%s0 + $0xa0] sm:$0xff]
    %v102 = vld [vmem:[%s0 + $0xa8] sm:$0xff]
    %v103 = vld [vmem:[%s0 + $0xb0] sm:$0xff]
    %v104 = vld [vmem:[%s0 + $0xb8] sm:$0xff]
    %v105 = vld [vmem:[%s0 + $0xc0] sm:$0xff]
    %v106 = vld [vmem:[%s0 + $0xc8] sm:$0xff]
    %v107 = vld [vmem:[%s0 + $0xd0] sm:$0xff]
    %v108 = vld [vmem:[%s0 + $0xd8] sm:$0xff]
    %v109 = vld [vmem:[%s0 + $0xe0] sm:$0xff]
    %v110 = vld [vmem:[%s0 + $0xe8] sm:$0xff]
    %v111 = vld [vmem:[%s0 + $0xf0] sm:$0xff]
    %v112 = vld [vmem:[%s0 + $0xf8] sm:$0xff]
    %v113 = vld [vmem:[%s1] sm:$0xf]
    %v114 = vld [vmem:[%s1 + $0x4] sm:$0xf]
    %v115 = vld [vmem:[%s1 + $0x8] sm:$0xf]
    %v116 = vld [vmem:[%s1 + $0xc] sm:$0xf]
    %v117 = vld [vmem:[%s1 + $0x10] sm:$0xf]
    %v118 = vld [vmem:[%s1 + $0x14] sm:$0xf]
    %v119 = vld [vmem:[%s1 + $0x18] sm:$0xf]
    %v120 = vld [vmem:[%s1 + $0x1c] sm:$0xf]
    %v121 = vld [vmem:[%s1 + $0x20] sm:$0xf]
    %v122 = vld [vmem:[%s1 + $0x24] sm:$0xf]
    %v123 = vld [vmem:[%s1 + $0x28] sm:$0xf]
    %v124 = vld [vmem:[%s1 + $0x2c] sm:$0xf]
    %v125 = vld [vmem:[%s1 + $0x30] sm:$0xf]
    %v126 = vld [vmem:[%s1 + $0x34] sm:$0xf]
    %v127 = vld [vmem:[%s1 + $0x38] sm:$0xf]
    %v128 = vld [vmem:[%s1 + $0x3c] sm:$0xf]
    %v129 = vld [vmem:[%s1 + $0x40] sm:$0xf]
    %v130 = vld [vmem:[%s1 + $0x44] sm:$0xf]
    %v131 = vld [vmem:[%s1 + $0x48] sm:$0xf]
    %v132 = vld [vmem:[%s1 + $0x4c] sm:$0xf]
    %v133 = vld [vmem:[%s1 + $0x50] sm:$0xf]
    %v134 = vld [vmem:[%s1 + $0x54] sm:$0xf]
    %v135 = vld [vmem:[%s1 + $0x58] sm:$0xf]
    %v136 = vld [vmem:[%s1 + $0x5c] sm:$0xf]
    %v137 = vld [vmem:[%s1 + $0x60] sm:$0xf]
    %v138 = vld [vmem:[%s1 + $0x64] sm:$0xf]
    %v139 = vld [vmem:[%s1 + $0x68] sm:$0xf]
    %v140 = vld [vmem:[%s1 + $0x6c] sm:$0xf]
    %v141 = vld [vmem:[%s1 + $0x70] sm:$0xf]
    %v142 = vld [vmem:[%s1 + $0x74] sm:$0xf]
    %v143 = vld [vmem:[%s1 + $0x78] sm:$0xf]
    %v144 = vld [vmem:[%s1 + $0x7c] sm:$0xf]
    %v177 = vunpack.c.l.b16 %v81
    %v178 = vunpack.c.h.b16 %v81
    %v179 = vunpack.c.l.b16 %v82
    %v180 = vunpack.c.h.b16 %v82
    %v181 = vunpack.c.l.b16 %v83
    %v182 = vunpack.c.h.b16 %v83
    %v183 = vunpack.c.l.b16 %v84
    %v184 = vunpack.c.h.b16 %v84
    %v185 = vunpack.c.l.b16 %v85
    %v186 = vunpack.c.h.b16 %v85
    %v187 = vunpack.c.l.b16 %v86
    %v188 = vunpack.c.h.b16 %v86
    %v189 = vunpack.c.l.b16 %v87
    %v190 = vunpack.c.h.b16 %v87
    %v191 = vunpack.c.l.b16 %v88
    %v192 = vunpack.c.h.b16 %v88
    %v193 = vunpack.c.l.b16 %v89
    %v194 = vunpack.c.h.b16 %v89
    %v195 = vunpack.c.l.b16 %v90
    %v196 = vunpack.c.h.b16 %v90
    %v197 = vunpack.c.l.b16 %v91
    %v198 = vunpack.c.h.b16 %v91
    %v199 = vunpack.c.l.b16 %v92
    %v200 = vunpack.c.h.b16 %v92
    %v201 = vunpack.c.l.b16 %v93
    %v202 = vunpack.c.h.b16 %v93
    %v203 = vunpack.c.l.b16 %v94
    %v204 = vunpack.c.h.b16 %v94
    %v205 = vunpack.c.l.b16 %v95
    %v206 = vunpack.c.h.b16 %v95
    %v207 = vunpack.c.l.b16 %v96
    %v208 = vunpack.c.h.b16 %v96
    %v209 = vunpack.c.l.b16 %v97
    %v210 = vunpack.c.h.b16 %v97
    %v211 = vunpack.c.l.b16 %v98
    %v212 = vunpack.c.h.b16 %v98
    %v213 = vunpack.c.l.b16 %v99
    %v214 = vunpack.c.h.b16 %v99
    %v215 = vunpack.c.l.b16 %v100
    %v216 = vunpack.c.h.b16 %v100
    %v217 = vunpack.c.l.b16 %v101
    %v218 = vunpack.c.h.b16 %v101
    %v219 = vunpack.c.l.b16 %v102
    %v220 = vunpack.c.h.b16 %v102
    %v221 = vunpack.c.l.b16 %v103
    %v222 = vunpack.c.h.b16 %v103
    %v223 = vunpack.c.l.b16 %v104
    %v224 = vunpack.c.h.b16 %v104
    %v225 = vunpack.c.l.b16 %v105
    %v226 = vunpack.c.h.b16 %v105
    %v227 = vunpack.c.l.b16 %v106
    %v228 = vunpack.c.h.b16 %v106
    %v229 = vunpack.c.l.b16 %v107
    %v230 = vunpack.c.h.b16 %v107
    %v231 = vunpack.c.l.b16 %v108
    %v232 = vunpack.c.h.b16 %v108
    %v233 = vunpack.c.l.b16 %v109
    %v234 = vunpack.c.h.b16 %v109
    %v235 = vunpack.c.l.b16 %v110
    %v236 = vunpack.c.h.b16 %v110
    %v237 = vunpack.c.l.b16 %v111
    %v238 = vunpack.c.h.b16 %v111
    %v239 = vunpack.c.l.b16 %v112
    %v240 = vunpack.c.h.b16 %v112
    %v241 = vpack.c.b16 %v179, %v177
    %v242 = vpack.c.b16 %v180, %v178
    %v243 = vpack.c.b16 %v183, %v181
    %v244 = vpack.c.b16 %v184, %v182
    %v245 = vpack.c.b16 %v187, %v185
    %v246 = vpack.c.b16 %v188, %v186
    %v247 = vpack.c.b16 %v191, %v189
    %v248 = vpack.c.b16 %v192, %v190
    %v249 = vpack.c.b16 %v195, %v193
    %v250 = vpack.c.b16 %v196, %v194
    %v251 = vpack.c.b16 %v199, %v197
    %v252 = vpack.c.b16 %v200, %v198
    %v253 = vpack.c.b16 %v203, %v201
    %v254 = vpack.c.b16 %v204, %v202
    %v255 = vpack.c.b16 %v207, %v205
    %v256 = vpack.c.b16 %v208, %v206
    %v257 = vpack.c.b16 %v211, %v209
    %v258 = vpack.c.b16 %v212, %v210
    %v259 = vpack.c.b16 %v215, %v213
    %v260 = vpack.c.b16 %v216, %v214
    %v261 = vpack.c.b16 %v219, %v217
    %v262 = vpack.c.b16 %v220, %v218
    %v263 = vpack.c.b16 %v223, %v221
    %v264 = vpack.c.b16 %v224, %v222
    %v265 = vpack.c.b16 %v227, %v225
    %v266 = vpack.c.b16 %v228, %v226
    %v267 = vpack.c.b16 %v231, %v229
    %v268 = vpack.c.b16 %v232, %v230
    %v269 = vpack.c.b16 %v235, %v233
    %v270 = vpack.c.b16 %v236, %v234
    %v271 = vpack.c.b16 %v239, %v237
    %v272 = vpack.c.b16 %v240, %v238
    %v337 = vunpack.c.l.b16 %v113
    %v338 = vunpack.c.l.b16 %v114
    %v339 = vunpack.c.l.b16 %v115
    %v340 = vunpack.c.l.b16 %v116
    %v341 = vunpack.c.l.b16 %v117
    %v342 = vunpack.c.l.b16 %v118
    %v343 = vunpack.c.l.b16 %v119
    %v344 = vunpack.c.l.b16 %v120
    %v345 = vunpack.c.l.b16 %v121
    %v346 = vunpack.c.l.b16 %v122
    %v347 = vunpack.c.l.b16 %v123
    %v348 = vunpack.c.l.b16 %v124
    %v349 = vunpack.c.l.b16 %v125
    %v350 = vunpack.c.l.b16 %v126
    %v351 = vunpack.c.l.b16 %v127
    %v352 = vunpack.c.l.b16 %v128
    %v353 = vunpack.c.l.b16 %v129
    %v354 = vunpack.c.l.b16 %v130
    %v355 = vunpack.c.l.b16 %v131
    %v356 = vunpack.c.l.b16 %v132
    %v357 = vunpack.c.l.b16 %v133
    %v358 = vunpack.c.l.b16 %v134
    %v359 = vunpack.c.l.b16 %v135
    %v360 = vunpack.c.l.b16 %v136
    %v361 = vunpack.c.l.b16 %v137
    %v362 = vunpack.c.l.b16 %v138
    %v363 = vunpack.c.l.b16 %v139
    %v364 = vunpack.c.l.b16 %v140
    %v365 = vunpack.c.l.b16 %v141
    %v366 = vunpack.c.l.b16 %v142
    %v367 = vunpack.c.l.b16 %v143
    %v368 = vunpack.c.l.b16 %v144
    %v369 = vpack.c.b16 %v338, %v337
    %v370 = vpack.c.b16 %v340, %v339
    %v371 = vpack.c.b16 %v342, %v341
    %v372 = vpack.c.b16 %v344, %v343
    %v373 = vpack.c.b16 %v346, %v345
    %v374 = vpack.c.b16 %v348, %v347
    %v375 = vpack.c.b16 %v350, %v349
    %v376 = vpack.c.b16 %v352, %v351
    %v377 = vpack.c.b16 %v354, %v353
    %v378 = vpack.c.b16 %v356, %v355
    %v379 = vpack.c.b16 %v358, %v357
    %v380 = vpack.c.b16 %v360, %v359
    %v381 = vpack.c.b16 %v362, %v361
    %v382 = vpack.c.b16 %v364, %v363
    %v383 = vpack.c.b16 %v366, %v365
    %v384 = vpack.c.b16 %v368, %v367
    %401 = vmatprep.subr.bf16.mxu0 0
    %402 = vmatpush1.bf16.msra.mxu0 %v369
    %403 = vmatprep.subr.bf16.mxu0 0
    %404 = vmatpush1.bf16.msra.mxu0 %v370
    %405 = vmatprep.subr.bf16.mxu0 0
    %406 = vmatpush1.bf16.msra.mxu0 %v371
    %407 = vmatprep.subr.bf16.mxu0 0
    %408 = vmatpush1.bf16.msra.mxu0 %v372
    %409 = vmatprep.subr.bf16.mxu0 0
    %410 = vmatpush1.bf16.msra.mxu0 %v373
    %411 = vmatprep.subr.bf16.mxu0 0
    %412 = vmatpush1.bf16.msra.mxu0 %v374
    %413 = vmatprep.subr.bf16.mxu0 0
    %414 = vmatpush1.bf16.msra.mxu0 %v375
    %415 = vmatprep.subr.bf16.mxu0 0
    %416 = vmatpush1.bf16.msra.mxu0 %v376
    %417 = vmatprep.subr.bf16.mxu0 0
    %418 = vmatpush1.bf16.msra.mxu0 %v377
    %419 = vmatprep.subr.bf16.mxu0 0
    %420 = vmatpush1.bf16.msra.mxu0 %v378
    %421 = vmatprep.subr.bf16.mxu0 0
    %422 = vmatpush1.bf16.msra.mxu0 %v379
    %423 = vmatprep.subr.bf16.mxu0 0
    %424 = vmatpush1.bf16.msra.mxu0 %v380
    %425 = vmatprep.subr.bf16.mxu0 0
    %426 = vmatpush1.bf16.msra.mxu0 %v381
    %427 = vmatprep.subr.bf16.mxu0 0
    %428 = vmatpush1.bf16.msra.mxu0 %v382
    %429 = vmatprep.subr.bf16.mxu0 0
    %430 = vmatpush1.bf16.msra.mxu0 %v383
    %431 = vmatprep.subr.bf16.mxu0 0
    %432 = vmatpush1.bf16.msra.mxu0 %v384
    %433 = vmatprep.mubr.bf16.mxu0 %v242
    %434 = vmatmul.mubr.bf16.gmra.mrb[0].mxu0 %v241
    %v435 = vpop.f32.mrb[0].mxu0
    %v436 = vadd.f32 0.0, %v435
    %v437 = vpop.f32.mrb[0].mxu0
    %v438 = vpop.f32.mrb[0].mxu0
    %v439 = vadd.f32 0.0, %v438
    %v440 = vpop.f32.mrb[0].mxu0
    %441 = vmatprep.mubr.bf16.mxu0 %v244
    %442 = vmatmul.mubr.bf16.gmra.mrb[0].mxu0 %v243
    %v443 = vpop.f32.mrb[0].mxu0
    %v444 = vadd.f32 0.0, %v443
    %v445 = vpop.f32.mrb[0].mxu0
    %v446 = vpop.f32.mrb[0].mxu0
    %v447 = vadd.f32 0.0, %v446
    %v448 = vpop.f32.mrb[0].mxu0
    %449 = vmatprep.mubr.bf16.mxu0 %v246
    %450 = vmatmul.mubr.bf16.gmra.mrb[0].mxu0 %v245
    %v451 = vpop.f32.mrb[0].mxu0
    %v452 = vadd.f32 0.0, %v451
    %v453 = vpop.f32.mrb[0].mxu0
    %v454 = vpop.f32.mrb[0].mxu0
    %v455 = vadd.f32 0.0, %v454
    %v456 = vpop.f32.mrb[0].mxu0
    %457 = vmatprep.mubr.bf16.mxu0 %v248
    %458 = vmatmul.mubr.bf16.gmra.mrb[0].mxu0 %v247
    %v459 = vpop.f32.mrb[0].mxu0
    %v460 = vadd.f32 0.0, %v459
    %v461 = vpop.f32.mrb[0].mxu0
    %v462 = vpop.f32.mrb[0].mxu0
    %v463 = vadd.f32 0.0, %v462
    %v464 = vpop.f32.mrb[0].mxu0
    %465 = vmatprep.mubr.bf16.mxu0 %v250
    %466 = vmatmul.mubr.bf16.gmra.mrb[0].mxu0 %v249
    %v467 = vpop.f32.mrb[0].mxu0
    %v468 = vadd.f32 0.0, %v467
    %v469 = vpop.f32.mrb[0].mxu0
    %v470 = vpop.f32.mrb[0].mxu0
    %v471 = vadd.f32 0.0, %v470
    %v472 = vpop.f32.mrb[0].mxu0
    %473 = vmatprep.mubr.bf16.mxu0 %v252
    %474 = vmatmul.mubr.bf16.gmra.mrb[0].mxu0 %v251
    %v475 = vpop.f32.mrb[0].mxu0
    %v476 = vadd.f32 0.0, %v475
    %v477 = vpop.f32.mrb[0].mxu0
    %v478 = vpop.f32.mrb[0].mxu0
    %v479 = vadd.f32 0.0, %v478
    %v480 = vpop.f32.mrb[0].mxu0
    %481 = vmatprep.mubr.bf16.mxu0 %v254
    %482 = vmatmul.mubr.bf16.gmra.mrb[0].mxu0 %v253
    %v483 = vpop.f32.mrb[0].mxu0
    %v484 = vadd.f32 0.0, %v483
    %v485 = vpop.f32.mrb[0].mxu0
    %v486 = vpop.f32.mrb[0].mxu0
    %v487 = vadd.f32 0.0, %v486
    %v488 = vpop.f32.mrb[0].mxu0
    %489 = vmatprep.mubr.bf16.mxu0 %v256
    %490 = vmatmul.mubr.bf16.gmra.mrb[0].mxu0 %v255
    %v491 = vpop.f32.mrb[0].mxu0
    %v492 = vadd.f32 0.0, %v491
    %v493 = vpop.f32.mrb[0].mxu0
    %v494 = vpop.f32.mrb[0].mxu0
    %v495 = vadd.f32 0.0, %v494
    %v496 = vpop.f32.mrb[0].mxu0
    %497 = vmatprep.mubr.bf16.mxu0 %v258
    %498 = vmatmul.mubr.bf16.gmra.mrb[0].mxu0 %v257
    %v499 = vpop.f32.mrb[0].mxu0
    %v500 = vadd.f32 0.0, %v499
    %v501 = vpop.f32.mrb[0].mxu0
    %v502 = vpop.f32.mrb[0].mxu0
    %v503 = vadd.f32 0.0, %v502
    %v504 = vpop.f32.mrb[0].mxu0
    %505 = vmatprep.mubr.bf16.mxu0 %v260
    %506 = vmatmul.mubr.bf16.gmra.mrb[0].mxu0 %v259
    %v507 = vpop.f32.mrb[0].mxu0
    %v508 = vadd.f32 0.0, %v507
    %v509 = vpop.f32.mrb[0].mxu0
    %v510 = vpop.f32.mrb[0].mxu0
    %v511 = vadd.f32 0.0, %v510
    %v512 = vpop.f32.mrb[0].mxu0
    %513 = vmatprep.mubr.bf16.mxu0 %v262
    %514 = vmatmul.mubr.bf16.gmra.mrb[0].mxu0 %v261
    %v515 = vpop.f32.mrb[0].mxu0
    %v516 = vadd.f32 0.0, %v515
    %v517 = vpop.f32.mrb[0].mxu0
    %v518 = vpop.f32.mrb[0].mxu0
    %v519 = vadd.f32 0.0, %v518
    %v520 = vpop.f32.mrb[0].mxu0
    %521 = vmatprep.mubr.bf16.mxu0 %v264
    %522 = vmatmul.mubr.bf16.gmra.mrb[0].mxu0 %v263
    %v523 = vpop.f32.mrb[0].mxu0
    %v524 = vadd.f32 0.0, %v523
    %v525 = vpop.f32.mrb[0].mxu0
    %v526 = vpop.f32.mrb[0].mxu0
    %v527 = vadd.f32 0.0, %v526
    %v528 = vpop.f32.mrb[0].mxu0
    %529 = vmatprep.mubr.bf16.mxu0 %v266
    %530 = vmatmul.mubr.bf16.gmra.mrb[0].mxu0 %v265
    %v531 = vpop.f32.mrb[0].mxu0
    %v532 = vadd.f32 0.0, %v531
    %v533 = vpop.f32.mrb[0].mxu0
    %v534 = vpop.f32.mrb[0].mxu0
    %v535 = vadd.f32 0.0, %v534
    %v536 = vpop.f32.mrb[0].mxu0
    %537 = vmatprep.mubr.bf16.mxu0 %v268
    %538 = vmatmul.mubr.bf16.gmra.mrb[0].mxu0 %v267
    %v539 = vpop.f32.mrb[0].mxu0
    %v540 = vadd.f32 0.0, %v539
    %v541 = vpop.f32.mrb[0].mxu0
    %v542 = vpop.f32.mrb[0].mxu0
    %v543 = vadd.f32 0.0, %v542
    %v544 = vpop.f32.mrb[0].mxu0
    %545 = vmatprep.mubr.bf16.mxu0 %v270
    %546 = vmatmul.mubr.bf16.gmra.mrb[0].mxu0 %v269
    %v547 = vpop.f32.mrb[0].mxu0
    %v548 = vadd.f32 0.0, %v547
    %v549 = vpop.f32.mrb[0].mxu0
    %v550 = vpop.f32.mrb[0].mxu0
    %v551 = vadd.f32 0.0, %v550
    %v552 = vpop.f32.mrb[0].mxu0
    %553 = vmatprep.mubr.bf16.mxu0 %v272
    %554 = vmatmul.mubr.bf16.gmra.mrb[0].mxu0 %v271
    %v555 = vpop.f32.mrb[0].mxu0
    %v556 = vadd.f32 0.0, %v555
    %v557 = vpop.f32.mrb[0].mxu0
    %v558 = vpop.f32.mrb[0].mxu0
    %v559 = vadd.f32 0.0, %v558
    %v560 = vpop.f32.mrb[0].mxu0
    %561 = vdwg.mxu0
    %v562 = vadd.f32 %v49, %v436
    %v563 = vadd.f32 %v50, %v439
    %v564 = vadd.f32 %v51, %v444
    %v565 = vadd.f32 %v52, %v447
    %v566 = vadd.f32 %v53, %v452
    %v567 = vadd.f32 %v54, %v455
    %v568 = vadd.f32 %v55, %v460
    %v569 = vadd.f32 %v56, %v463
    %v570 = vadd.f32 %v57, %v468
    %v571 = vadd.f32 %v58, %v471
    %v572 = vadd.f32 %v59, %v476
    %v573 = vadd.f32 %v60, %v479
    %v574 = vadd.f32 %v61, %v484
    %v575 = vadd.f32 %v62, %v487
    %v576 = vadd.f32 %v63, %v492
    %v577 = vadd.f32 %v64, %v495
    %v578 = vadd.f32 %v65, %v500
    %v579 = vadd.f32 %v66, %v503
    %v580 = vadd.f32 %v67, %v508
    %v581 = vadd.f32 %v68, %v511
    %v582 = vadd.f32 %v69, %v516
    %v583 = vadd.f32 %v70, %v519
    %v584 = vadd.f32 %v71, %v524
    %v585 = vadd.f32 %v72, %v527
    %v586 = vadd.f32 %v73, %v532
    %v587 = vadd.f32 %v74, %v535
    %v588 = vadd.f32 %v75, %v540
    %v589 = vadd.f32 %v76, %v543
    %v590 = vadd.f32 %v77, %v548
    %v591 = vadd.f32 %v78, %v551
    %v592 = vadd.f32 %v79, %v556
    %v593 = vadd.f32 %v80, %v559
    %594 = vst [vmem:[#allocation2] sm:$0xff] %v562
    %595 = vst [vmem:[#allocation2 + $0x8] sm:$0xff] %v563
    %596 = vst [vmem:[#allocation2 + $0x10] sm:$0xff] %v564
    %597 = vst [vmem:[#allocation2 + $0x18] sm:$0xff] %v565
    %598 = vst [vmem:[#allocation2 + $0x20] sm:$0xff] %v566
    %599 = vst [vmem:[#allocation2 + $0x28] sm:$0xff] %v567
    %600 = vst [vmem:[#allocation2 + $0x30] sm:$0xff] %v568
    %601 = vst [vmem:[#allocation2 + $0x38] sm:$0xff] %v569
    %602 = vst [vmem:[#allocation2 + $0x40] sm:$0xff] %v570
    %603 = vst [vmem:[#allocation2 + $0x48] sm:$0xff] %v571
    %604 = vst [vmem:[#allocation2 + $0x50] sm:$0xff] %v572
    %605 = vst [vmem:[#allocation2 + $0x58] sm:$0xff] %v573
    %606 = vst [vmem:[#allocation2 + $0x60] sm:$0xff] %v574
    %607 = vst [vmem:[#allocation2 + $0x68] sm:$0xff] %v575
    %608 = vst [vmem:[#allocation2 + $0x70] sm:$0xff] %v576
    %609 = vst [vmem:[#allocation2 + $0x78] sm:$0xff] %v577
    %610 = vst [vmem:[#allocation2 + $0x80] sm:$0xff] %v578
    %611 = vst [vmem:[#allocation2 + $0x88] sm:$0xff] %v579
    %612 = vst [vmem:[#allocation2 + $0x90] sm:$0xff] %v580
    %613 = vst [vmem:[#allocation2 + $0x98] sm:$0xff] %v581
    %614 = vst [vmem:[#allocation2 + $0xa0] sm:$0xff] %v582
    %615 = vst [vmem:[#allocation2 + $0xa8] sm:$0xff] %v583
    %616 = vst [vmem:[#allocation2 + $0xb0] sm:$0xff] %v584
    %617 = vst [vmem:[#allocation2 + $0xb8] sm:$0xff] %v585
    %618 = vst [vmem:[#allocation2 + $0xc0] sm:$0xff] %v586
    %619 = vst [vmem:[#allocation2 + $0xc8] sm:$0xff] %v587
    %620 = vst [vmem:[#allocation2 + $0xd0] sm:$0xff] %v588
    %621 = vst [vmem:[#allocation2 + $0xd8] sm:$0xff] %v589
    %622 = vst [vmem:[#allocation2 + $0xe0] sm:$0xff] %v590
    %623 = vst [vmem:[#allocation2 + $0xe8] sm:$0xff] %v591
    %624 = vst [vmem:[#allocation2 + $0xf0] sm:$0xff] %v592
    %625 = vst [vmem:[#allocation2 + $0xf8] sm:$0xff] %v593
    // Predicated region
    $region14: #{gcn_net_forward.5} parent=1 // pred_check
      %p626 = pneg %p13
    $region15: #{gcn_net_forward.5} parent=1 // pred_check_branch
      %628 = sbr.rel (%p626) target = $region17
    $region16: #{gcn_net_forward.5} parent=1 // pred_region
      %v629 = vld [vmem:[#allocation2] sm:$0xff]
      %v630 = vld [vmem:[#allocation2 + $0x8] sm:$0xff]
      %v631 = vld [vmem:[#allocation2 + $0x10] sm:$0xff]
      %v632 = vld [vmem:[#allocation2 + $0x18] sm:$0xff]
      %v633 = vld [vmem:[#allocation2 + $0x20] sm:$0xff]
      %v634 = vld [vmem:[#allocation2 + $0x28] sm:$0xff]
      %v635 = vld [vmem:[#allocation2 + $0x30] sm:$0xff]
      %v636 = vld [vmem:[#allocation2 + $0x38] sm:$0xff]
      %v637 = vld [vmem:[#allocation2 + $0x40] sm:$0xff]
      %v638 = vld [vmem:[#allocation2 + $0x48] sm:$0xff]
      %v639 = vld [vmem:[#allocation2 + $0x50] sm:$0xff]
      %v640 = vld [vmem:[#allocation2 + $0x58] sm:$0xff]
      %v641 = vld [vmem:[#allocation2 + $0x60] sm:$0xff]
      %v642 = vld [vmem:[#allocation2 + $0x68] sm:$0xff]
      %v643 = vld [vmem:[#allocation2 + $0x70] sm:$0xff]
      %v644 = vld [vmem:[#allocation2 + $0x78] sm:$0xff]
      %v645 = vld [vmem:[#allocation2 + $0x80] sm:$0xff]
      %v646 = vld [vmem:[#allocation2 + $0x88] sm:$0xff]
      %v647 = vld [vmem:[#allocation2 + $0x90] sm:$0xff]
      %v648 = vld [vmem:[#allocation2 + $0x98] sm:$0xff]
      %v649 = vld [vmem:[#allocation2 + $0xa0] sm:$0xff]
      %v650 = vld [vmem:[#allocation2 + $0xa8] sm:$0xff]
      %v651 = vld [vmem:[#allocation2 + $0xb0] sm:$0xff]
      %v652 = vld [vmem:[#allocation2 + $0xb8] sm:$0xff]
      %v653 = vld [vmem:[#allocation2 + $0xc0] sm:$0xff]
      %v654 = vld [vmem:[#allocation2 + $0xc8] sm:$0xff]
      %v655 = vld [vmem:[#allocation2 + $0xd0] sm:$0xff]
      %v656 = vld [vmem:[#allocation2 + $0xd8] sm:$0xff]
      %v657 = vld [vmem:[#allocation2 + $0xe0] sm:$0xff]
      %v658 = vld [vmem:[#allocation2 + $0xe8] sm:$0xff]
      %v659 = vld [vmem:[#allocation2 + $0xf0] sm:$0xff]
      %v660 = vld [vmem:[#allocation2 + $0xf8] sm:$0xff]
      %v661 = vlaneseq
      %v662 = vand.u32 %v661, 127
      %vm663 = vcmp.lt.s32.totalorder %v662, 4
      %v664 = vsel %vm663, %v629, -inf
      %v665 = vsel %vm663, %v630, -inf
      %v666 = vsel %vm663, %v631, -inf
      %v667 = vsel %vm663, %v632, -inf
      %v668 = vsel %vm663, %v633, -inf
      %v669 = vsel %vm663, %v634, -inf
      %v670 = vsel %vm663, %v635, -inf
      %v671 = vsel %vm663, %v636, -inf
      %v672 = vsel %vm663, %v637, -inf
      %v673 = vsel %vm663, %v638, -inf
      %v674 = vsel %vm663, %v639, -inf
      %v675 = vsel %vm663, %v640, -inf
      %v676 = vsel %vm663, %v641, -inf
      %v677 = vsel %vm663, %v642, -inf
      %v678 = vsel %vm663, %v643, -inf
      %v679 = vsel %vm663, %v644, -inf
      %v680 = vsel %vm663, %v645, -inf
      %v681 = vsel %vm663, %v646, -inf
      %v682 = vsel %vm663, %v647, -inf
      %v683 = vsel %vm663, %v648, -inf
      %v684 = vsel %vm663, %v649, -inf
      %v685 = vsel %vm663, %v650, -inf
      %v686 = vsel %vm663, %v651, -inf
      %v687 = vsel %vm663, %v652, -inf
      %v688 = vsel %vm663, %v653, -inf
      %v689 = vsel %vm663, %v654, -inf
      %v690 = vsel %vm663, %v655, -inf
      %v691 = vsel %vm663, %v656, -inf
      %v692 = vsel %vm663, %v657, -inf
      %v693 = vsel %vm663, %v658, -inf
      %v694 = vsel %vm663, %v659, -inf
      %v695 = vsel %vm663, %v660, -inf
      %696 = vmax.xlane.f32.xlu0 %v664
      %v697 = vpop.xlane.xlu0 %696
      %698 = vmax.xlane.f32.xlu0 %v665
      %v699 = vpop.xlane.xlu0 %698
      %700 = vmax.xlane.f32.xlu0 %v666
      %v701 = vpop.xlane.xlu0 %700
      %702 = vmax.xlane.f32.xlu0 %v667
      %v703 = vpop.xlane.xlu0 %702
      %704 = vmax.xlane.f32.xlu0 %v668
      %v705 = vpop.xlane.xlu0 %704
      %706 = vmax.xlane.f32.xlu0 %v669
      %v707 = vpop.xlane.xlu0 %706
      %708 = vmax.xlane.f32.xlu0 %v670
      %v709 = vpop.xlane.xlu0 %708
      %710 = vmax.xlane.f32.xlu0 %v671
      %v711 = vpop.xlane.xlu0 %710
      %712 = vmax.xlane.f32.xlu0 %v672
      %v713 = vpop.xlane.xlu0 %712
      %714 = vmax.xlane.f32.xlu0 %v673
      %v715 = vpop.xlane.xlu0 %714
      %716 = vmax.xlane.f32.xlu0 %v674
      %v717 = vpop.xlane.xlu0 %716
      %718 = vmax.xlane.f32.xlu0 %v675
      %v719 = vpop.xlane.xlu0 %718
      %720 = vmax.xlane.f32.xlu0 %v676
      %v721 = vpop.xlane.xlu0 %720
      %722 = vmax.xlane.f32.xlu0 %v677
      %v723 = vpop.xlane.xlu0 %722
      %724 = vmax.xlane.f32.xlu0 %v678
      %v725 = vpop.xlane.xlu0 %724
      %726 = vmax.xlane.f32.xlu0 %v679
      %v727 = vpop.xlane.xlu0 %726
      %728 = vmax.xlane.f32.xlu0 %v680
      %v729 = vpop.xlane.xlu0 %728
      %730 = vmax.xlane.f32.xlu0 %v681
      %v731 = vpop.xlane.xlu0 %730
      %732 = vmax.xlane.f32.xlu0 %v682
      %v733 = vpop.xlane.xlu0 %732
      %734 = vmax.xlane.f32.xlu0 %v683
      %v735 = vpop.xlane.xlu0 %734
      %736 = vmax.xlane.f32.xlu0 %v684
      %v737 = vpop.xlane.xlu0 %736
      %738 = vmax.xlane.f32.xlu0 %v685
      %v739 = vpop.xlane.xlu0 %738
      %740 = vmax.xlane.f32.xlu0 %v686
      %v741 = vpop.xlane.xlu0 %740
      %742 = vmax.xlane.f32.xlu0 %v687
      %v743 = vpop.xlane.xlu0 %742
      %744 = vmax.xlane.f32.xlu0 %v688
      %v745 = vpop.xlane.xlu0 %744
      %746 = vmax.xlane.f32.xlu0 %v689
      %v747 = vpop.xlane.xlu0 %746
      %748 = vmax.xlane.f32.xlu0 %v690
      %v749 = vpop.xlane.xlu0 %748
      %750 = vmax.xlane.f32.xlu0 %v691
      %v751 = vpop.xlane.xlu0 %750
      %752 = vmax.xlane.f32.xlu0 %v692
      %v753 = vpop.xlane.xlu0 %752
      %754 = vmax.xlane.f32.xlu0 %v693
      %v755 = vpop.xlane.xlu0 %754
      %756 = vmax.xlane.f32.xlu0 %v694
      %v757 = vpop.xlane.xlu0 %756
      %758 = vmax.xlane.f32.xlu0 %v695
      %v759 = vpop.xlane.xlu0 %758
      %v760 = vsub.f32 %v664, %v697
      %v761 = vsub.f32 %v665, %v699
      %v762 = vsub.f32 %v666, %v701
      %v763 = vsub.f32 %v667, %v703
      %v764 = vsub.f32 %v668, %v705
      %v765 = vsub.f32 %v669, %v707
      %v766 = vsub.f32 %v670, %v709
      %v767 = vsub.f32 %v671, %v711
      %v768 = vsub.f32 %v672, %v713
      %v769 = vsub.f32 %v673, %v715
      %v770 = vsub.f32 %v674, %v717
      %v771 = vsub.f32 %v675, %v719
      %v772 = vsub.f32 %v676, %v721
      %v773 = vsub.f32 %v677, %v723
      %v774 = vsub.f32 %v678, %v725
      %v775 = vsub.f32 %v679, %v727
      %v776 = vsub.f32 %v680, %v729
      %v777 = vsub.f32 %v681, %v731
      %v778 = vsub.f32 %v682, %v733
      %v779 = vsub.f32 %v683, %v735
      %v780 = vsub.f32 %v684, %v737
      %v781 = vsub.f32 %v685, %v739
      %v782 = vsub.f32 %v686, %v741
      %v783 = vsub.f32 %v687, %v743
      %v784 = vsub.f32 %v688, %v745
      %v785 = vsub.f32 %v689, %v747
      %v786 = vsub.f32 %v690, %v749
      %v787 = vsub.f32 %v691, %v751
      %v788 = vsub.f32 %v692, %v753
      %v789 = vsub.f32 %v693, %v755
      %v790 = vsub.f32 %v694, %v757
      %v791 = vsub.f32 %v695, %v759
      %v792 = vmul.f32 %v760, 1.442695
      %v793 = vpow.pop %v792
      %v794 = vmul.f32 %v761, 1.442695
      %v795 = vpow.pop %v794
      %v796 = vmul.f32 %v762, 1.442695
      %v797 = vpow.pop %v796
      %v798 = vmul.f32 %v763, 1.442695
      %v799 = vpow.pop %v798
      %v800 = vmul.f32 %v764, 1.442695
      %v801 = vpow.pop %v800
      %v802 = vmul.f32 %v765, 1.442695
      %v803 = vpow.pop %v802
      %v804 = vmul.f32 %v766, 1.442695
      %v805 = vpow.pop %v804
      %v806 = vmul.f32 %v767, 1.442695
      %v807 = vpow.pop %v806
      %v808 = vmul.f32 %v768, 1.442695
      %v809 = vpow.pop %v808
      %v810 = vmul.f32 %v769, 1.442695
      %v811 = vpow.pop %v810
      %v812 = vmul.f32 %v770, 1.442695
      %v813 = vpow.pop %v812
      %v814 = vmul.f32 %v771, 1.442695
      %v815 = vpow.pop %v814
      %v816 = vmul.f32 %v772, 1.442695
      %v817 = vpow.pop %v816
      %v818 = vmul.f32 %v773, 1.442695
      %v819 = vpow.pop %v818
      %v820 = vmul.f32 %v774, 1.442695
      %v821 = vpow.pop %v820
      %v822 = vmul.f32 %v775, 1.442695
      %v823 = vpow.pop %v822
      %v824 = vmul.f32 %v776, 1.442695
      %v825 = vpow.pop %v824
      %v826 = vmul.f32 %v777, 1.442695
      %v827 = vpow.pop %v826
      %v828 = vmul.f32 %v778, 1.442695
      %v829 = vpow.pop %v828
      %v830 = vmul.f32 %v779, 1.442695
      %v831 = vpow.pop %v830
      %v832 = vmul.f32 %v780, 1.442695
      %v833 = vpow.pop %v832
      %v834 = vmul.f32 %v781, 1.442695
      %v835 = vpow.pop %v834
      %v836 = vmul.f32 %v782, 1.442695
      %v837 = vpow.pop %v836
      %v838 = vmul.f32 %v783, 1.442695
      %v839 = vpow.pop %v838
      %v840 = vmul.f32 %v784, 1.442695
      %v841 = vpow.pop %v840
      %v842 = vmul.f32 %v785, 1.442695
      %v843 = vpow.pop %v842
      %v844 = vmul.f32 %v786, 1.442695
      %v845 = vpow.pop %v844
      %v846 = vmul.f32 %v787, 1.442695
      %v847 = vpow.pop %v846
      %v848 = vmul.f32 %v788, 1.442695
      %v849 = vpow.pop %v848
      %v850 = vmul.f32 %v789, 1.442695
      %v851 = vpow.pop %v850
      %v852 = vmul.f32 %v790, 1.442695
      %v853 = vpow.pop %v852
      %v854 = vmul.f32 %v791, 1.442695
      %v855 = vpow.pop %v854
      %v856 = vsel %vm663, %v793, 0.0
      %v857 = vsel %vm663, %v795, 0.0
      %v858 = vsel %vm663, %v797, 0.0
      %v859 = vsel %vm663, %v799, 0.0
      %v860 = vsel %vm663, %v801, 0.0
      %v861 = vsel %vm663, %v803, 0.0
      %v862 = vsel %vm663, %v805, 0.0
      %v863 = vsel %vm663, %v807, 0.0
      %v864 = vsel %vm663, %v809, 0.0
      %v865 = vsel %vm663, %v811, 0.0
      %v866 = vsel %vm663, %v813, 0.0
      %v867 = vsel %vm663, %v815, 0.0
      %v868 = vsel %vm663, %v817, 0.0
      %v869 = vsel %vm663, %v819, 0.0
      %v870 = vsel %vm663, %v821, 0.0
      %v871 = vsel %vm663, %v823, 0.0
      %v872 = vsel %vm663, %v825, 0.0
      %v873 = vsel %vm663, %v827, 0.0
      %v874 = vsel %vm663, %v829, 0.0
      %v875 = vsel %vm663, %v831, 0.0
      %v876 = vsel %vm663, %v833, 0.0
      %v877 = vsel %vm663, %v835, 0.0
      %v878 = vsel %vm663, %v837, 0.0
      %v879 = vsel %vm663, %v839, 0.0
      %v880 = vsel %vm663, %v841, 0.0
      %v881 = vsel %vm663, %v843, 0.0
      %v882 = vsel %vm663, %v845, 0.0
      %v883 = vsel %vm663, %v847, 0.0
      %v884 = vsel %vm663, %v849, 0.0
      %v885 = vsel %vm663, %v851, 0.0
      %v886 = vsel %vm663, %v853, 0.0
      %v887 = vsel %vm663, %v855, 0.0
      %888 = vadd.xlane.f32.xlu0 %v856
      %v889 = vpop.xlane.xlu0 %888
      %890 = vadd.xlane.f32.xlu0 %v857
      %v891 = vpop.xlane.xlu0 %890
      %892 = vadd.xlane.f32.xlu0 %v858
      %v893 = vpop.xlane.xlu0 %892
      %894 = vadd.xlane.f32.xlu0 %v859
      %v895 = vpop.xlane.xlu0 %894
      %896 = vadd.xlane.f32.xlu0 %v860
      %v897 = vpop.xlane.xlu0 %896
      %898 = vadd.xlane.f32.xlu0 %v861
      %v899 = vpop.xlane.xlu0 %898
      %900 = vadd.xlane.f32.xlu0 %v862
      %v901 = vpop.xlane.xlu0 %900
      %902 = vadd.xlane.f32.xlu0 %v863
      %v903 = vpop.xlane.xlu0 %902
      %904 = vadd.xlane.f32.xlu0 %v864
      %v905 = vpop.xlane.xlu0 %904
      %906 = vadd.xlane.f32.xlu0 %v865
      %v907 = vpop.xlane.xlu0 %906
      %908 = vadd.xlane.f32.xlu0 %v866
      %v909 = vpop.xlane.xlu0 %908
      %910 = vadd.xlane.f32.xlu0 %v867
      %v911 = vpop.xlane.xlu0 %910
      %912 = vadd.xlane.f32.xlu0 %v868
      %v913 = vpop.xlane.xlu0 %912
      %914 = vadd.xlane.f32.xlu0 %v869
      %v915 = vpop.xlane.xlu0 %914
      %916 = vadd.xlane.f32.xlu0 %v870
      %v917 = vpop.xlane.xlu0 %916
      %918 = vadd.xlane.f32.xlu0 %v871
      %v919 = vpop.xlane.xlu0 %918
      %920 = vadd.xlane.f32.xlu0 %v872
      %v921 = vpop.xlane.xlu0 %920
      %922 = vadd.xlane.f32.xlu0 %v873
      %v923 = vpop.xlane.xlu0 %922
      %924 = vadd.xlane.f32.xlu0 %v874
      %v925 = vpop.xlane.xlu0 %924
      %926 = vadd.xlane.f32.xlu0 %v875
      %v927 = vpop.xlane.xlu0 %926
      %928 = vadd.xlane.f32.xlu0 %v876
      %v929 = vpop.xlane.xlu0 %928
      %930 = vadd.xlane.f32.xlu0 %v877
      %v931 = vpop.xlane.xlu0 %930
      %932 = vadd.xlane.f32.xlu0 %v878
      %v933 = vpop.xlane.xlu0 %932
      %934 = vadd.xlane.f32.xlu0 %v879
      %v935 = vpop.xlane.xlu0 %934
      %936 = vadd.xlane.f32.xlu0 %v880
      %v937 = vpop.xlane.xlu0 %936
      %938 = vadd.xlane.f32.xlu0 %v881
      %v939 = vpop.xlane.xlu0 %938
      %940 = vadd.xlane.f32.xlu0 %v882
      %v941 = vpop.xlane.xlu0 %940
      %942 = vadd.xlane.f32.xlu0 %v883
      %v943 = vpop.xlane.xlu0 %942
      %944 = vadd.xlane.f32.xlu0 %v884
      %v945 = vpop.xlane.xlu0 %944
      %946 = vadd.xlane.f32.xlu0 %v885
      %v947 = vpop.xlane.xlu0 %946
      %948 = vadd.xlane.f32.xlu0 %v886
      %v949 = vpop.xlane.xlu0 %948
      %950 = vadd.xlane.f32.xlu0 %v887
      %v951 = vpop.xlane.xlu0 %950
      %v952 = vlog2.pop %v889
      %v953 = vmul.f32 %v952, 0.6931472
      %v954 = vlog2.pop %v891
      %v955 = vmul.f32 %v954, 0.6931472
      %v956 = vlog2.pop %v893
      %v957 = vmul.f32 %v956, 0.6931472
      %v958 = vlog2.pop %v895
      %v959 = vmul.f32 %v958, 0.6931472
      %v960 = vlog2.pop %v897
      %v961 = vmul.f32 %v960, 0.6931472
      %v962 = vlog2.pop %v899
      %v963 = vmul.f32 %v962, 0.6931472
      %v964 = vlog2.pop %v901
      %v965 = vmul.f32 %v964, 0.6931472
      %v966 = vlog2.pop %v903
      %v967 = vmul.f32 %v966, 0.6931472
      %v968 = vlog2.pop %v905
      %v969 = vmul.f32 %v968, 0.6931472
      %v970 = vlog2.pop %v907
      %v971 = vmul.f32 %v970, 0.6931472
      %v972 = vlog2.pop %v909
      %v973 = vmul.f32 %v972, 0.6931472
      %v974 = vlog2.pop %v911
      %v975 = vmul.f32 %v974, 0.6931472
      %v976 = vlog2.pop %v913
      %v977 = vmul.f32 %v976, 0.6931472
      %v978 = vlog2.pop %v915
      %v979 = vmul.f32 %v978, 0.6931472
      %v980 = vlog2.pop %v917
      %v981 = vmul.f32 %v980, 0.6931472
      %v982 = vlog2.pop %v919
      %v983 = vmul.f32 %v982, 0.6931472
      %v984 = vlog2.pop %v921
      %v985 = vmul.f32 %v984, 0.6931472
      %v986 = vlog2.pop %v923
      %v987 = vmul.f32 %v986, 0.6931472
      %v988 = vlog2.pop %v925
      %v989 = vmul.f32 %v988, 0.6931472
      %v990 = vlog2.pop %v927
      %v991 = vmul.f32 %v990, 0.6931472
      %v992 = vlog2.pop %v929
      %v993 = vmul.f32 %v992, 0.6931472
      %v994 = vlog2.pop %v931
      %v995 = vmul.f32 %v994, 0.6931472
      %v996 = vlog2.pop %v933
      %v997 = vmul.f32 %v996, 0.6931472
      %v998 = vlog2.pop %v935
      %v999 = vmul.f32 %v998, 0.6931472
      %v1000 = vlog2.pop %v937
      %v1001 = vmul.f32 %v1000, 0.6931472
      %v1002 = vlog2.pop %v939
      %v1003 = vmul.f32 %v1002, 0.6931472
      %v1004 = vlog2.pop %v941
      %v1005 = vmul.f32 %v1004, 0.6931472
      %v1006 = vlog2.pop %v943
      %v1007 = vmul.f32 %v1006, 0.6931472
      %v1008 = vlog2.pop %v945
      %v1009 = vmul.f32 %v1008, 0.6931472
      %v1010 = vlog2.pop %v947
      %v1011 = vmul.f32 %v1010, 0.6931472
      %v1012 = vlog2.pop %v949
      %v1013 = vmul.f32 %v1012, 0.6931472
      %v1014 = vlog2.pop %v951
      %v1015 = vmul.f32 %v1014, 0.6931472
      %v1016 = vsub.f32 %v760, %v953
      %v1017 = vsub.f32 %v761, %v955
      %v1018 = vsub.f32 %v762, %v957
      %v1019 = vsub.f32 %v763, %v959
      %v1020 = vsub.f32 %v764, %v961
      %v1021 = vsub.f32 %v765, %v963
      %v1022 = vsub.f32 %v766, %v965
      %v1023 = vsub.f32 %v767, %v967
      %v1024 = vsub.f32 %v768, %v969
      %v1025 = vsub.f32 %v769, %v971
      %v1026 = vsub.f32 %v770, %v973
      %v1027 = vsub.f32 %v771, %v975
      %v1028 = vsub.f32 %v772, %v977
      %v1029 = vsub.f32 %v773, %v979
      %v1030 = vsub.f32 %v774, %v981
      %v1031 = vsub.f32 %v775, %v983
      %v1032 = vsub.f32 %v776, %v985
      %v1033 = vsub.f32 %v777, %v987
      %v1034 = vsub.f32 %v778, %v989
      %v1035 = vsub.f32 %v779, %v991
      %v1036 = vsub.f32 %v780, %v993
      %v1037 = vsub.f32 %v781, %v995
      %v1038 = vsub.f32 %v782, %v997
      %v1039 = vsub.f32 %v783, %v999
      %v1040 = vsub.f32 %v784, %v1001
      %v1041 = vsub.f32 %v785, %v1003
      %v1042 = vsub.f32 %v786, %v1005
      %v1043 = vsub.f32 %v787, %v1007
      %v1044 = vsub.f32 %v788, %v1009
      %v1045 = vsub.f32 %v789, %v1011
      %v1046 = vsub.f32 %v790, %v1013
      %v1047 = vsub.f32 %v791, %v1015
      %v1048 = vsel %vm663, %v1016, 0.0
      %v1049 = vsel %vm663, %v1017, 0.0
      %v1050 = vsel %vm663, %v1018, 0.0
      %v1051 = vsel %vm663, %v1019, 0.0
      %v1052 = vsel %vm663, %v1020, 0.0
      %v1053 = vsel %vm663, %v1021, 0.0
      %v1054 = vsel %vm663, %v1022, 0.0
      %v1055 = vsel %vm663, %v1023, 0.0
      %v1056 = vsel %vm663, %v1024, 0.0
      %v1057 = vsel %vm663, %v1025, 0.0
      %v1058 = vsel %vm663, %v1026, 0.0
      %v1059 = vsel %vm663, %v1027, 0.0
      %v1060 = vsel %vm663, %v1028, 0.0
      %v1061 = vsel %vm663, %v1029, 0.0
      %v1062 = vsel %vm663, %v1030, 0.0
      %v1063 = vsel %vm663, %v1031, 0.0
      %v1064 = vsel %vm663, %v1032, 0.0
      %v1065 = vsel %vm663, %v1033, 0.0
      %v1066 = vsel %vm663, %v1034, 0.0
      %v1067 = vsel %vm663, %v1035, 0.0
      %v1068 = vsel %vm663, %v1036, 0.0
      %v1069 = vsel %vm663, %v1037, 0.0
      %v1070 = vsel %vm663, %v1038, 0.0
      %v1071 = vsel %vm663, %v1039, 0.0
      %v1072 = vsel %vm663, %v1040, 0.0
      %v1073 = vsel %vm663, %v1041, 0.0
      %v1074 = vsel %vm663, %v1042, 0.0
      %v1075 = vsel %vm663, %v1043, 0.0
      %v1076 = vsel %vm663, %v1044, 0.0
      %v1077 = vsel %vm663, %v1045, 0.0
      %v1078 = vsel %vm663, %v1046, 0.0
      %v1079 = vsel %vm663, %v1047, 0.0
      %1080 = vst [vmem:[#allocation3] sm:$0xff] %v1048
      %1081 = vst [vmem:[#allocation3 + $0x8] sm:$0xff] %v1049
      %1082 = vst [vmem:[#allocation3 + $0x10] sm:$0xff] %v1050
      %1083 = vst [vmem:[#allocation3 + $0x18] sm:$0xff] %v1051
      %1084 = vst [vmem:[#allocation3 + $0x20] sm:$0xff] %v1052
      %1085 = vst [vmem:[#allocation3 + $0x28] sm:$0xff] %v1053
      %1086 = vst [vmem:[#allocation3 + $0x30] sm:$0xff] %v1054
      %1087 = vst [vmem:[#allocation3 + $0x38] sm:$0xff] %v1055
      %1088 = vst [vmem:[#allocation3 + $0x40] sm:$0xff] %v1056
      %1089 = vst [vmem:[#allocation3 + $0x48] sm:$0xff] %v1057
      %1090 = vst [vmem:[#allocation3 + $0x50] sm:$0xff] %v1058
      %1091 = vst [vmem:[#allocation3 + $0x58] sm:$0xff] %v1059
      %1092 = vst [vmem:[#allocation3 + $0x60] sm:$0xff] %v1060
      %1093 = vst [vmem:[#allocation3 + $0x68] sm:$0xff] %v1061
      %1094 = vst [vmem:[#allocation3 + $0x70] sm:$0xff] %v1062
      %1095 = vst [vmem:[#allocation3 + $0x78] sm:$0xff] %v1063
      %1096 = vst [vmem:[#allocation3 + $0x80] sm:$0xff] %v1064
      %1097 = vst [vmem:[#allocation3 + $0x88] sm:$0xff] %v1065
      %1098 = vst [vmem:[#allocation3 + $0x90] sm:$0xff] %v1066
      %1099 = vst [vmem:[#allocation3 + $0x98] sm:$0xff] %v1067
      %1100 = vst [vmem:[#allocation3 + $0xa0] sm:$0xff] %v1068
      %1101 = vst [vmem:[#allocation3 + $0xa8] sm:$0xff] %v1069
      %1102 = vst [vmem:[#allocation3 + $0xb0] sm:$0xff] %v1070
      %1103 = vst [vmem:[#allocation3 + $0xb8] sm:$0xff] %v1071
      %1104 = vst [vmem:[#allocation3 + $0xc0] sm:$0xff] %v1072
      %1105 = vst [vmem:[#allocation3 + $0xc8] sm:$0xff] %v1073
      %1106 = vst [vmem:[#allocation3 + $0xd0] sm:$0xff] %v1074
      %1107 = vst [vmem:[#allocation3 + $0xd8] sm:$0xff] %v1075
      %1108 = vst [vmem:[#allocation3 + $0xe0] sm:$0xff] %v1076
      %1109 = vst [vmem:[#allocation3 + $0xe8] sm:$0xff] %v1077
      %1110 = vst [vmem:[#allocation3 + $0xf0] sm:$0xff] %v1078
      %1111 = vst [vmem:[#allocation3 + $0xf8] sm:$0xff] %v1079
    $region17: #{gcn_net_forward.5} parent=1 // pred_fallthru
      _
    // Predicated region
    $region18: #{gcn_net_forward.5} parent=1 // pred_check
      _
    $region19: #{gcn_net_forward.5} parent=1 // pred_check_branch
      %1113 = sbr.rel (0) target = $region21
    $region20: #{gcn_net_forward.5} parent=1 // pred_region
      %s1115 = ssub.s32 4096, 4096
      %1116 = vsyncadd [#allocation4], %s1115
      %s1117 = sshll.u32 [#allocation3], 4
      %s1118 = int_to_ptr.vmem [resolvable:$true] %s1117
      %1123 = dma.vmem_to_hbm [thread:$0]  %s1118, 4096, %s2, [#allocation4], 128, 128, 8
    $region21: #{gcn_net_forward.5} parent=1 // pred_fallthru
      _
    // Predicated region
    $region22: #{gcn_net_forward.5} parent=1 // pred_check
      _
    $region23: #{gcn_net_forward.5} parent=1 // pred_check_branch
      %1125 = sbr.rel (0) target = $region25
    $region24: #{gcn_net_forward.5} parent=1 // pred_region
      %1126 = dma.done [#allocation4], 4096
    $region25: #{gcn_net_forward.5} parent=1 // pred_fallthru
      _
    %1127 = vsyncpa [#allocation4], 1

// kernel: gcn_net_forward.4
$region0: #{gcn_net_forward.4}
  #allocation0 [shape = 'u32[]', space=smem, size = 0x4, offset = 0x4, fixed_abs, tag = 'smem constant byte address 0x4 - core index']
  #allocation1 [shape = 'u32[144,128]{1,0:T(1,128)}', space=vmem, size = 0x12000, scoped, tag = 'internal scratch']
  #allocation2 [shape = 'f32[256,128]{1,0:T(8,128)}', space=vmem, size = 0x20000, scoped, tag = 'scratch operand']
  %s0 = inlined_call_operand.vmem [shape: bf16[256,256], index: 0, kind: input, shape index: {}]
  %s1 = inlined_call_operand.vmem [shape: bf16[256,128], index: 1, kind: input, shape index: {}]
  %s2 = inlined_call_operand.vmem [shape: bf16[128,128], index: 2, kind: input, shape index: {}]
  %s3 = inlined_call_operand.vmem [shape: f32[1,128], index: 3, kind: input, shape index: {}]
  %s4 = inlined_call_operand.vmem [shape: bf16[256,128], index: 4, kind: output, shape index: {}]
  %s5 = sld [smem:[#allocation0]]
  $region34: #{gcn_net_forward.4} parent=0
    _
  %s7 = ssub.s32 1, %s5
  %s8 = scalar_select 0, %s7, %s5
  // Predicated region
  $region2: #{gcn_net_forward.4} parent=0 // pred_check
    _
  $region3: #{gcn_net_forward.4} parent=0 // pred_check_branch
    %10 = sbr.rel (0) target = $region5
  $region4: #{gcn_net_forward.4} parent=0 // pred_region
    _
  $region5: #{gcn_net_forward.4} parent=0 // pred_fallthru
    _
  // Predicated region
  $region6: #{gcn_net_forward.4} parent=0 // pred_check
    _
  $region7: #{gcn_net_forward.4} parent=0 // pred_check_branch
    %12 = sbr.rel (0) target = $region9
  $region8: #{gcn_net_forward.4} parent=0 // pred_region
    _
  $region9: #{gcn_net_forward.4} parent=0 // pred_fallthru
    _
  // Predicated region
  $region10: #{gcn_net_forward.4} parent=0 // pred_check
    _
  $region11: #{gcn_net_forward.4} parent=0 // pred_check_branch
    %14 = sbr.rel (0) target = $region13
  $region12: #{gcn_net_forward.4} parent=0 // pred_region
    _
  $region13: #{gcn_net_forward.4} parent=0 // pred_fallthru
    _
  // Predicated region
  $region14: #{gcn_net_forward.4} parent=0 // pred_check
    _
  $region15: #{gcn_net_forward.4} parent=0 // pred_check_branch
    %16 = sbr.rel (0) target = $region17
  $region16: #{gcn_net_forward.4} parent=0 // pred_region
    _
  $region17: #{gcn_net_forward.4} parent=0 // pred_fallthru
    _
  %p18 = scmp.eq.s32.totalorder 0, 0
  // Predicated region
  $region18: #{gcn_net_forward.4} parent=0 // pred_check
    %p19 = pneg %p18
  $region19: #{gcn_net_forward.4} parent=0 // pred_check_branch
    %21 = sbr.rel (%p19) target = $region21
  $region20: #{gcn_net_forward.4} parent=0 // pred_region
    %22 = vst [vmem:[#allocation2] sm:$0xff] 0.0
    %23 = vst [vmem:[#allocation2 + $0x8] sm:$0xff] 0.0
    %24 = vst [vmem:[#allocation2 + $0x10] sm:$0xff] 0.0
    %25 = vst [vmem:[#allocation2 + $0x18] sm:$0xff] 0.0
    %26 = vst [vmem:[#allocation2 + $0x20] sm:$0xff] 0.0
    %27 = vst [vmem:[#allocation2 + $0x28] sm:$0xff] 0.0
    %28 = vst [vmem:[#allocation2 + $0x30] sm:$0xff] 0.0
    %29 = vst [vmem:[#allocation2 + $0x38] sm:$0xff] 0.0
    %30 = vst [vmem:[#allocation2 + $0x40] sm:$0xff] 0.0
    %31 = vst [vmem:[#allocation2 + $0x48] sm:$0xff] 0.0
    %32 = vst [vmem:[#allocation2 + $0x50] sm:$0xff] 0.0
    %33 = vst [vmem:[#allocation2 + $0x58] sm:$0xff] 0.0
    %34 = vst [vmem:[#allocation2 + $0x60] sm:$0xff] 0.0
    %35 = vst [vmem:[#allocation2 + $0x68] sm:$0xff] 0.0
    %36 = vst [vmem:[#allocation2 + $0x70] sm:$0xff] 0.0
    %37 = vst [vmem:[#allocation2 + $0x78] sm:$0xff] 0.0
    %38 = vst [vmem:[#allocation2 + $0x80] sm:$0xff] 0.0
    %39 = vst [vmem:[#allocation2 + $0x88] sm:$0xff] 0.0
    %40 = vst [vmem:[#allocation2 + $0x90] sm:$0xff] 0.0
    %41 = vst [vmem:[#allocation2 + $0x98] sm:$0xff] 0.0
    %42 = vst [vmem:[#allocation2 + $0xa0] sm:$0xff] 0.0
    %43 = vst [vmem:[#allocation2 + $0xa8] sm:$0xff] 0.0
    %44 = vst [vmem:[#allocation2 + $0xb0] sm:$0xff] 0.0
    %45 = vst [vmem:[#allocation2 + $0xb8] sm:$0xff] 0.0
    %46 = vst [vmem:[#allocation2 + $0xc0] sm:$0xff] 0.0
    %47 = vst [vmem:[#allocation2 + $0xc8] sm:$0xff] 0.0
    %48 = vst [vmem:[#allocation2 + $0xd0] sm:$0xff] 0.0
    %49 = vst [vmem:[#allocation2 + $0xd8] sm:$0xff] 0.0
    %50 = vst [vmem:[#allocation2 + $0xe0] sm:$0xff] 0.0
    %51 = vst [vmem:[#allocation2 + $0xe8] sm:$0xff] 0.0
    %52 = vst [vmem:[#allocation2 + $0xf0] sm:$0xff] 0.0
    %53 = vst [vmem:[#allocation2 + $0xf8] sm:$0xff] 0.0
  $region21: #{gcn_net_forward.4} parent=0 // pred_fallthru
    _
  %v54 = vld [vmem:[#allocation2] sm:$0xff]
  %v55 = vld [vmem:[#allocation2 + $0x8] sm:$0xff]
  %v56 = vld [vmem:[#allocation2 + $0x10] sm:$0xff]
  %v57 = vld [vmem:[#allocation2 + $0x18] sm:$0xff]
  %v58 = vld [vmem:[#allocation2 + $0x20] sm:$0xff]
  %v59 = vld [vmem:[#allocation2 + $0x28] sm:$0xff]
  %v60 = vld [vmem:[#allocation2 + $0x30] sm:$0xff]
  %v61 = vld [vmem:[#allocation2 + $0x38] sm:$0xff]
  %v62 = vld [vmem:[#allocation2 + $0x40] sm:$0xff]
  %v63 = vld [vmem:[#allocation2 + $0x48] sm:$0xff]
  %v64 = vld [vmem:[#allocation2 + $0x50] sm:$0xff]
  %v65 = vld [vmem:[#allocation2 + $0x58] sm:$0xff]
  %v66 = vld [vmem:[#allocation2 + $0x60] sm:$0xff]
  %v67 = vld [vmem:[#allocation2 + $0x68] sm:$0xff]
  %v68 = vld [vmem:[#allocation2 + $0x70] sm:$0xff]
  %v69 = vld [vmem:[#allocation2 + $0x78] sm:$0xff]
  %v70 = vld [vmem:[#allocation2 + $0x80] sm:$0xff]
  %v71 = vld [vmem:[#allocation2 + $0x88] sm:$0xff]
  %v72 = vld [vmem:[#allocation2 + $0x90] sm:$0xff]
  %v73 = vld [vmem:[#allocation2 + $0x98] sm:$0xff]
  %v74 = vld [vmem:[#allocation2 + $0xa0] sm:$0xff]
  %v75 = vld [vmem:[#allocation2 + $0xa8] sm:$0xff]
  %v76 = vld [vmem:[#allocation2 + $0xb0] sm:$0xff]
  %v77 = vld [vmem:[#allocation2 + $0xb8] sm:$0xff]
  %v78 = vld [vmem:[#allocation2 + $0xc0] sm:$0xff]
  %v79 = vld [vmem:[#allocation2 + $0xc8] sm:$0xff]
  %v80 = vld [vmem:[#allocation2 + $0xd0] sm:$0xff]
  %v81 = vld [vmem:[#allocation2 + $0xd8] sm:$0xff]
  %v82 = vld [vmem:[#allocation2 + $0xe0] sm:$0xff]
  %v83 = vld [vmem:[#allocation2 + $0xe8] sm:$0xff]
  %v84 = vld [vmem:[#allocation2 + $0xf0] sm:$0xff]
  %v85 = vld [vmem:[#allocation2 + $0xf8] sm:$0xff]
  %v86 = vld [vmem:[%s0] sm:$0xff]
  %v87 = vld [vmem:[%s0 + $0x8] sm:$0xff]
  %v88 = vld [vmem:[%s0 + $0x10] sm:$0xff]
  %v89 = vld [vmem:[%s0 + $0x18] sm:$0xff]
  %v90 = vld [vmem:[%s0 + $0x20] sm:$0xff]
  %v91 = vld [vmem:[%s0 + $0x28] sm:$0xff]
  %v92 = vld [vmem:[%s0 + $0x30] sm:$0xff]
  %v93 = vld [vmem:[%s0 + $0x38] sm:$0xff]
  %v94 = vld [vmem:[%s0 + $0x40] sm:$0xff]
  %v95 = vld [vmem:[%s0 + $0x48] sm:$0xff]
  %v96 = vld [vmem:[%s0 + $0x50] sm:$0xff]
  %v97 = vld [vmem:[%s0 + $0x58] sm:$0xff]
  %v98 = vld [vmem:[%s0 + $0x60] sm:$0xff]
  %v99 = vld [vmem:[%s0 + $0x68] sm:$0xff]
  %v100 = vld [vmem:[%s0 + $0x70] sm:$0xff]
  %v101 = vld [vmem:[%s0 + $0x78] sm:$0xff]
  %v102 = vld [vmem:[%s0 + $0x80] sm:$0xff]
  %v103 = vld [vmem:[%s0 + $0x88] sm:$0xff]
  %v104 = vld [vmem:[%s0 + $0x90] sm:$0xff]
  %v105 = vld [vmem:[%s0 + $0x98] sm:$0xff]
  %v106 = vld [vmem:[%s0 + $0xa0] sm:$0xff]
  %v107 = vld [vmem:[%s0 + $0xa8] sm:$0xff]
  %v108 = vld [vmem:[%s0 + $0xb0] sm:$0xff]
  %v109 = vld [vmem:[%s0 + $0xb8] sm:$0xff]
  %v110 = vld [vmem:[%s0 + $0xc0] sm:$0xff]
  %v111 = vld [vmem:[%s0 + $0xc8] sm:$0xff]
  %v112 = vld [vmem:[%s0 + $0xd0] sm:$0xff]
  %v113 = vld [vmem:[%s0 + $0xd8] sm:$0xff]
  %v114 = vld [vmem:[%s0 + $0xe0] sm:$0xff]
  %v115 = vld [vmem:[%s0 + $0xe8] sm:$0xff]
  %v116 = vld [vmem:[%s0 + $0xf0] sm:$0xff]
  %v117 = vld [vmem:[%s0 + $0xf8] sm:$0xff]
  %v118 = vld [vmem:[%s1] sm:$0xf]
  %v119 = vld [vmem:[%s1 + $0x4] sm:$0xf]
  %v120 = vld [vmem:[%s1 + $0x8] sm:$0xf]
  %v121 = vld [vmem:[%s1 + $0xc] sm:$0xf]
  %v122 = vld [vmem:[%s1 + $0x10] sm:$0xf]
  %v123 = vld [vmem:[%s1 + $0x14] sm:$0xf]
  %v124 = vld [vmem:[%s1 + $0x18] sm:$0xf]
  %v125 = vld [vmem:[%s1 + $0x1c] sm:$0xf]
  %v126 = vld [vmem:[%s1 + $0x20] sm:$0xf]
  %v127 = vld [vmem:[%s1 + $0x24] sm:$0xf]
  %v128 = vld [vmem:[%s1 + $0x28] sm:$0xf]
  %v129 = vld [vmem:[%s1 + $0x2c] sm:$0xf]
  %v130 = vld [vmem:[%s1 + $0x30] sm:$0xf]
  %v131 = vld [vmem:[%s1 + $0x34] sm:$0xf]
  %v132 = vld [vmem:[%s1 + $0x38] sm:$0xf]
  %v133 = vld [vmem:[%s1 + $0x3c] sm:$0xf]
  %v134 = vld [vmem:[%s1 + $0x40] sm:$0xf]
  %v135 = vld [vmem:[%s1 + $0x44] sm:$0xf]
  %v136 = vld [vmem:[%s1 + $0x48] sm:$0xf]
  %v137 = vld [vmem:[%s1 + $0x4c] sm:$0xf]
  %v138 = vld [vmem:[%s1 + $0x50] sm:$0xf]
  %v139 = vld [vmem:[%s1 + $0x54] sm:$0xf]
  %v140 = vld [vmem:[%s1 + $0x58] sm:$0xf]
  %v141 = vld [vmem:[%s1 + $0x5c] sm:$0xf]
  %v142 = vld [vmem:[%s1 + $0x60] sm:$0xf]
  %v143 = vld [vmem:[%s1 + $0x64] sm:$0xf]
  %v144 = vld [vmem:[%s1 + $0x68] sm:$0xf]
  %v145 = vld [vmem:[%s1 + $0x6c] sm:$0xf]
  %v146 = vld [vmem:[%s1 + $0x70] sm:$0xf]
  %v147 = vld [vmem:[%s1 + $0x74] sm:$0xf]
  %v148 = vld [vmem:[%s1 + $0x78] sm:$0xf]
  %v149 = vld [vmem:[%s1 + $0x7c] sm:$0xf]
  %v182 = vunpack.c.l.b16 %v86
  %v183 = vunpack.c.h.b16 %v86
  %v184 = vunpack.c.l.b16 %v87
  %v185 = vunpack.c.h.b16 %v87
  %v186 = vunpack.c.l.b16 %v88
  %v187 = vunpack.c.h.b16 %v88
  %v188 = vunpack.c.l.b16 %v89
  %v189 = vunpack.c.h.b16 %v89
  %v190 = vunpack.c.l.b16 %v90
  %v191 = vunpack.c.h.b16 %v90
  %v192 = vunpack.c.l.b16 %v91
  %v193 = vunpack.c.h.b16 %v91
  %v194 = vunpack.c.l.b16 %v92
  %v195 = vunpack.c.h.b16 %v92
  %v196 = vunpack.c.l.b16 %v93
  %v197 = vunpack.c.h.b16 %v93
  %v198 = vunpack.c.l.b16 %v94
  %v199 = vunpack.c.h.b16 %v94
  %v200 = vunpack.c.l.b16 %v95
  %v201 = vunpack.c.h.b16 %v95
  %v202 = vunpack.c.l.b16 %v96
  %v203 = vunpack.c.h.b16 %v96
  %v204 = vunpack.c.l.b16 %v97
  %v205 = vunpack.c.h.b16 %v97
  %v206 = vunpack.c.l.b16 %v98
  %v207 = vunpack.c.h.b16 %v98
  %v208 = vunpack.c.l.b16 %v99
  %v209 = vunpack.c.h.b16 %v99
  %v210 = vunpack.c.l.b16 %v100
  %v211 = vunpack.c.h.b16 %v100
  %v212 = vunpack.c.l.b16 %v101
  %v213 = vunpack.c.h.b16 %v101
  %v214 = vunpack.c.l.b16 %v102
  %v215 = vunpack.c.h.b16 %v102
  %v216 = vunpack.c.l.b16 %v103
  %v217 = vunpack.c.h.b16 %v103
  %v218 = vunpack.c.l.b16 %v104
  %v219 = vunpack.c.h.b16 %v104
  %v220 = vunpack.c.l.b16 %v105
  %v221 = vunpack.c.h.b16 %v105
  %v222 = vunpack.c.l.b16 %v106
  %v223 = vunpack.c.h.b16 %v106
  %v224 = vunpack.c.l.b16 %v107
  %v225 = vunpack.c.h.b16 %v107
  %v226 = vunpack.c.l.b16 %v108
  %v227 = vunpack.c.h.b16 %v108
  %v228 = vunpack.c.l.b16 %v109
  %v229 = vunpack.c.h.b16 %v109
  %v230 = vunpack.c.l.b16 %v110
  %v231 = vunpack.c.h.b16 %v110
  %v232 = vunpack.c.l.b16 %v111
  %v233 = vunpack.c.h.b16 %v111
  %v234 = vunpack.c.l.b16 %v112
  %v235 = vunpack.c.h.b16 %v112
  %v236 = vunpack.c.l.b16 %v113
  %v237 = vunpack.c.h.b16 %v113
  %v238 = vunpack.c.l.b16 %v114
  %v239 = vunpack.c.h.b16 %v114
  %v240 = vunpack.c.l.b16 %v115
  %v241 = vunpack.c.h.b16 %v115
  %v242 = vunpack.c.l.b16 %v116
  %v243 = vunpack.c.h.b16 %v116
  %v244 = vunpack.c.l.b16 %v117
  %v245 = vunpack.c.h.b16 %v117
  %v246 = vpack.c.b16 %v184, %v182
  %v247 = vpack.c.b16 %v185, %v183
  %v248 = vpack.c.b16 %v188, %v186
  %v249 = vpack.c.b16 %v189, %v187
  %v250 = vpack.c.b16 %v192, %v190
  %v251 = vpack.c.b16 %v193, %v191
  %v252 = vpack.c.b16 %v196, %v194
  %v253 = vpack.c.b16 %v197, %v195
  %v254 = vpack.c.b16 %v200, %v198
  %v255 = vpack.c.b16 %v201, %v199
  %v256 = vpack.c.b16 %v204, %v202
  %v257 = vpack.c.b16 %v205, %v203
  %v258 = vpack.c.b16 %v208, %v206
  %v259 = vpack.c.b16 %v209, %v207
  %v260 = vpack.c.b16 %v212, %v210
  %v261 = vpack.c.b16 %v213, %v211
  %v262 = vpack.c.b16 %v216, %v214
  %v263 = vpack.c.b16 %v217, %v215
  %v264 = vpack.c.b16 %v220, %v218
  %v265 = vpack.c.b16 %v221, %v219
  %v266 = vpack.c.b16 %v224, %v222
  %v267 = vpack.c.b16 %v225, %v223
  %v268 = vpack.c.b16 %v228, %v226
  %v269 = vpack.c.b16 %v229, %v227
  %v270 = vpack.c.b16 %v232, %v230
  %v271 = vpack.c.b16 %v233, %v231
  %v272 = vpack.c.b16 %v236, %v234
  %v273 = vpack.c.b16 %v237, %v235
  %v274 = vpack.c.b16 %v240, %v238
  %v275 = vpack.c.b16 %v241, %v239
  %v276 = vpack.c.b16 %v244, %v242
  %v277 = vpack.c.b16 %v245, %v243
  %v342 = vunpack.c.l.b16 %v118
  %v343 = vunpack.c.l.b16 %v119
  %v344 = vunpack.c.l.b16 %v120
  %v345 = vunpack.c.l.b16 %v121
  %v346 = vunpack.c.l.b16 %v122
  %v347 = vunpack.c.l.b16 %v123
  %v348 = vunpack.c.l.b16 %v124
  %v349 = vunpack.c.l.b16 %v125
  %v350 = vunpack.c.l.b16 %v126
  %v351 = vunpack.c.l.b16 %v127
  %v352 = vunpack.c.l.b16 %v128
  %v353 = vunpack.c.l.b16 %v129
  %v354 = vunpack.c.l.b16 %v130
  %v355 = vunpack.c.l.b16 %v131
  %v356 = vunpack.c.l.b16 %v132
  %v357 = vunpack.c.l.b16 %v133
  %v358 = vunpack.c.l.b16 %v134
  %v359 = vunpack.c.l.b16 %v135
  %v360 = vunpack.c.l.b16 %v136
  %v361 = vunpack.c.l.b16 %v137
  %v362 = vunpack.c.l.b16 %v138
  %v363 = vunpack.c.l.b16 %v139
  %v364 = vunpack.c.l.b16 %v140
  %v365 = vunpack.c.l.b16 %v141
  %v366 = vunpack.c.l.b16 %v142
  %v367 = vunpack.c.l.b16 %v143
  %v368 = vunpack.c.l.b16 %v144
  %v369 = vunpack.c.l.b16 %v145
  %v370 = vunpack.c.l.b16 %v146
  %v371 = vunpack.c.l.b16 %v147
  %v372 = vunpack.c.l.b16 %v148
  %v373 = vunpack.c.l.b16 %v149
  %v374 = vpack.c.b16 %v343, %v342
  %v375 = vpack.c.b16 %v345, %v344
  %v376 = vpack.c.b16 %v347, %v346
  %v377 = vpack.c.b16 %v349, %v348
  %v378 = vpack.c.b16 %v351, %v350
  %v379 = vpack.c.b16 %v353, %v352
  %v380 = vpack.c.b16 %v355, %v354
  %v381 = vpack.c.b16 %v357, %v356
  %v382 = vpack.c.b16 %v359, %v358
  %v383 = vpack.c.b16 %v361, %v360
  %v384 = vpack.c.b16 %v363, %v362
  %v385 = vpack.c.b16 %v365, %v364
  %v386 = vpack.c.b16 %v367, %v366
  %v387 = vpack.c.b16 %v369, %v368
  %v388 = vpack.c.b16 %v371, %v370
  %v389 = vpack.c.b16 %v373, %v372
  %406 = vmatprep.subr.bf16.mxu0 0
  %407 = vmatpush1.bf16.msra.mxu0 %v374
  %408 = vmatprep.subr.bf16.mxu0 0
  %409 = vmatpush1.bf16.msra.mxu0 %v375
  %410 = vmatprep.subr.bf16.mxu0 0
  %411 = vmatpush1.bf16.msra.mxu0 %v376
  %412 = vmatprep.subr.bf16.mxu0 0
  %413 = vmatpush1.bf16.msra.mxu0 %v377
  %414 = vmatprep.subr.bf16.mxu0 0
  %415 = vmatpush1.bf16.msra.mxu0 %v378
  %416 = vmatprep.subr.bf16.mxu0 0
  %417 = vmatpush1.bf16.msra.mxu0 %v379
  %418 = vmatprep.subr.bf16.mxu0 0
  %419 = vmatpush1.bf16.msra.mxu0 %v380
  %420 = vmatprep.subr.bf16.mxu0 0
  %421 = vmatpush1.bf16.msra.mxu0 %v381
  %422 = vmatprep.subr.bf16.mxu0 0
  %423 = vmatpush1.bf16.msra.mxu0 %v382
  %424 = vmatprep.subr.bf16.mxu0 0
  %425 = vmatpush1.bf16.msra.mxu0 %v383
  %426 = vmatprep.subr.bf16.mxu0 0
  %427 = vmatpush1.bf16.msra.mxu0 %v384
  %428 = vmatprep.subr.bf16.mxu0 0
  %429 = vmatpush1.bf16.msra.mxu0 %v385
  %430 = vmatprep.subr.bf16.mxu0 0
  %431 = vmatpush1.bf16.msra.mxu0 %v386
  %432 = vmatprep.subr.bf16.mxu0 0
  %433 = vmatpush1.bf16.msra.mxu0 %v387
  %434 = vmatprep.subr.bf16.mxu0 0
  %435 = vmatpush1.bf16.msra.mxu0 %v388
  %436 = vmatprep.subr.bf16.mxu0 0
  %437 = vmatpush1.bf16.msra.mxu0 %v389
  %438 = vmatprep.mubr.bf16.mxu0 %v247
  %439 = vmatmul.mubr.bf16.gmra.mrb[0].mxu0 %v246
  %v440 = vpop.f32.mrb[0].mxu0
  %v441 = vadd.f32 0.0, %v440
  %v442 = vpop.f32.mrb[0].mxu0
  %v443 = vpop.f32.mrb[0].mxu0
  %v444 = vadd.f32 0.0, %v443
  %v445 = vpop.f32.mrb[0].mxu0
  %446 = vmatprep.mubr.bf16.mxu0 %v249
  %447 = vmatmul.mubr.bf16.gmra.mrb[0].mxu0 %v248
  %v448 = vpop.f32.mrb[0].mxu0
  %v449 = vadd.f32 0.0, %v448
  %v450 = vpop.f32.mrb[0].mxu0
  %v451 = vpop.f32.mrb[0].mxu0
  %v452 = vadd.f32 0.0, %v451
  %v453 = vpop.f32.mrb[0].mxu0
  %454 = vmatprep.mubr.bf16.mxu0 %v251
  %455 = vmatmul.mubr.bf16.gmra.mrb[0].mxu0 %v250
  %v456 = vpop.f32.mrb[0].mxu0
  %v457 = vadd.f32 0.0, %v456
  %v458 = vpop.f32.mrb[0].mxu0
  %v459 = vpop.f32.mrb[0].mxu0
  %v460 = vadd.f32 0.0, %v459
  %v461 = vpop.f32.mrb[0].mxu0
  %462 = vmatprep.mubr.bf16.mxu0 %v253
  %463 = vmatmul.mubr.bf16.gmra.mrb[0].mxu0 %v252
  %v464 = vpop.f32.mrb[0].mxu0
  %v465 = vadd.f32 0.0, %v464
  %v466 = vpop.f32.mrb[0].mxu0
  %v467 = vpop.f32.mrb[0].mxu0
  %v468 = vadd.f32 0.0, %v467
  %v469 = vpop.f32.mrb[0].mxu0
  %470 = vmatprep.mubr.bf16.mxu0 %v255
  %471 = vmatmul.mubr.bf16.gmra.mrb[0].mxu0 %v254
  %v472 = vpop.f32.mrb[0].mxu0
  %v473 = vadd.f32 0.0, %v472
  %v474 = vpop.f32.mrb[0].mxu0
  %v475 = vpop.f32.mrb[0].mxu0
  %v476 = vadd.f32 0.0, %v475
  %v477 = vpop.f32.mrb[0].mxu0
  %478 = vmatprep.mubr.bf16.mxu0 %v257
  %479 = vmatmul.mubr.bf16.gmra.mrb[0].mxu0 %v256
  %v480 = vpop.f32.mrb[0].mxu0
  %v481 = vadd.f32 0.0, %v480
  %v482 = vpop.f32.mrb[0].mxu0
  %v483 = vpop.f32.mrb[0].mxu0
  %v484 = vadd.f32 0.0, %v483
  %v485 = vpop.f32.mrb[0].mxu0
  %486 = vmatprep.mubr.bf16.mxu0 %v259
  %487 = vmatmul.mubr.bf16.gmra.mrb[0].mxu0 %v258
  %v488 = vpop.f32.mrb[0].mxu0
  %v489 = vadd.f32 0.0, %v488
  %v490 = vpop.f32.mrb[0].mxu0
  %v491 = vpop.f32.mrb[0].mxu0
  %v492 = vadd.f32 0.0, %v491
  %v493 = vpop.f32.mrb[0].mxu0
  %494 = vmatprep.mubr.bf16.mxu0 %v261
  %495 = vmatmul.mubr.bf16.gmra.mrb[0].mxu0 %v260
  %v496 = vpop.f32.mrb[0].mxu0
  %v497 = vadd.f32 0.0, %v496
  %v498 = vpop.f32.mrb[0].mxu0
  %v499 = vpop.f32.mrb[0].mxu0
  %v500 = vadd.f32 0.0, %v499
  %v501 = vpop.f32.mrb[0].mxu0
  %502 = vmatprep.mubr.bf16.mxu0 %v263
  %503 = vmatmul.mubr.bf16.gmra.mrb[0].mxu0 %v262
  %v504 = vpop.f32.mrb[0].mxu0
  %v505 = vadd.f32 0.0, %v504
  %v506 = vpop.f32.mrb[0].mxu0
  %v507 = vpop.f32.mrb[0].mxu0
  %v508 = vadd.f32 0.0, %v507
  %v509 = vpop.f32.mrb[0].mxu0
  %510 = vmatprep.mubr.bf16.mxu0 %v265
  %511 = vmatmul.mubr.bf16.gmra.mrb[0].mxu0 %v264
  %v512 = vpop.f32.mrb[0].mxu0
  %v513 = vadd.f32 0.0, %v512
  %v514 = vpop.f32.mrb[0].mxu0
  %v515 = vpop.f32.mrb[0].mxu0
  %v516 = vadd.f32 0.0, %v515
  %v517 = vpop.f32.mrb[0].mxu0
  %518 = vmatprep.mubr.bf16.mxu0 %v267
  %519 = vmatmul.mubr.bf16.gmra.mrb[0].mxu0 %v266
  %v520 = vpop.f32.mrb[0].mxu0
  %v521 = vadd.f32 0.0, %v520
  %v522 = vpop.f32.mrb[0].mxu0
  %v523 = vpop.f32.mrb[0].mxu0
  %v524 = vadd.f32 0.0, %v523
  %v525 = vpop.f32.mrb[0].mxu0
  %526 = vmatprep.mubr.bf16.mxu0 %v269
  %527 = vmatmul.mubr.bf16.gmra.mrb[0].mxu0 %v268
  %v528 = vpop.f32.mrb[0].mxu0
  %v529 = vadd.f32 0.0, %v528
  %v530 = vpop.f32.mrb[0].mxu0
  %v531 = vpop.f32.mrb[0].mxu0
  %v532 = vadd.f32 0.0, %v531
  %v533 = vpop.f32.mrb[0].mxu0
  %534 = vmatprep.mubr.bf16.mxu0 %v271
  %535 = vmatmul.mubr.bf16.gmra.mrb[0].mxu0 %v270
  %v536 = vpop.f32.mrb[0].mxu0
  %v537 = vadd.f32 0.0, %v536
  %v538 = vpop.f32.mrb[0].mxu0
  %v539 = vpop.f32.mrb[0].mxu0
  %v540 = vadd.f32 0.0, %v539
  %v541 = vpop.f32.mrb[0].mxu0
  %542 = vmatprep.mubr.bf16.mxu0 %v273
  %543 = vmatmul.mubr.bf16.gmra.mrb[0].mxu0 %v272
  %v544 = vpop.f32.mrb[0].mxu0
  %v545 = vadd.f32 0.0, %v544
  %v546 = vpop.f32.mrb[0].mxu0
  %v547 = vpop.f32.mrb[0].mxu0
  %v548 = vadd.f32 0.0, %v547
  %v549 = vpop.f32.mrb[0].mxu0
  %550 = vmatprep.mubr.bf16.mxu0 %v275
  %551 = vmatmul.mubr.bf16.gmra.mrb[0].mxu0 %v274
  %v552 = vpop.f32.mrb[0].mxu0
  %v553 = vadd.f32 0.0, %v552
  %v554 = vpop.f32.mrb[0].mxu0
  %v555 = vpop.f32.mrb[0].mxu0
  %v556 = vadd.f32 0.0, %v555
  %v557 = vpop.f32.mrb[0].mxu0
  %558 = vmatprep.mubr.bf16.mxu0 %v277
  %559 = vmatmul.mubr.bf16.gmra.mrb[0].mxu0 %v276
  %v560 = vpop.f32.mrb[0].mxu0
  %v561 = vadd.f32 0.0, %v560
  %v562 = vpop.f32.mrb[0].mxu0
  %v563 = vpop.f32.mrb[0].mxu0
  %v564 = vadd.f32 0.0, %v563
  %v565 = vpop.f32.mrb[0].mxu0
  %566 = vdwg.mxu0
  %v567 = vadd.f32 %v54, %v441
  %v568 = vadd.f32 %v55, %v444
  %v569 = vadd.f32 %v56, %v449
  %v570 = vadd.f32 %v57, %v452
  %v571 = vadd.f32 %v58, %v457
  %v572 = vadd.f32 %v59, %v460
  %v573 = vadd.f32 %v60, %v465
  %v574 = vadd.f32 %v61, %v468
  %v575 = vadd.f32 %v62, %v473
  %v576 = vadd.f32 %v63, %v476
  %v577 = vadd.f32 %v64, %v481
  %v578 = vadd.f32 %v65, %v484
  %v579 = vadd.f32 %v66, %v489
  %v580 = vadd.f32 %v67, %v492
  %v581 = vadd.f32 %v68, %v497
  %v582 = vadd.f32 %v69, %v500
  %v583 = vadd.f32 %v70, %v505
  %v584 = vadd.f32 %v71, %v508
  %v585 = vadd.f32 %v72, %v513
  %v586 = vadd.f32 %v73, %v516
  %v587 = vadd.f32 %v74, %v521
  %v588 = vadd.f32 %v75, %v524
  %v589 = vadd.f32 %v76, %v529
  %v590 = vadd.f32 %v77, %v532
  %v591 = vadd.f32 %v78, %v537
  %v592 = vadd.f32 %v79, %v540
  %v593 = vadd.f32 %v80, %v545
  %v594 = vadd.f32 %v81, %v548
  %v595 = vadd.f32 %v82, %v553
  %v596 = vadd.f32 %v83, %v556
  %v597 = vadd.f32 %v84, %v561
  %v598 = vadd.f32 %v85, %v564
  %599 = vst [vmem:[#allocation2] sm:$0xff] %v567
  %600 = vst [vmem:[#allocation2 + $0x8] sm:$0xff] %v568
  %601 = vst [vmem:[#allocation2 + $0x10] sm:$0xff] %v569
  %602 = vst [vmem:[#allocation2 + $0x18] sm:$0xff] %v570
  %603 = vst [vmem:[#allocation2 + $0x20] sm:$0xff] %v571
  %604 = vst [vmem:[#allocation2 + $0x28] sm:$0xff] %v572
  %605 = vst [vmem:[#allocation2 + $0x30] sm:$0xff] %v573
  %606 = vst [vmem:[#allocation2 + $0x38] sm:$0xff] %v574
  %607 = vst [vmem:[#allocation2 + $0x40] sm:$0xff] %v575
  %608 = vst [vmem:[#allocation2 + $0x48] sm:$0xff] %v576
  %609 = vst [vmem:[#allocation2 + $0x50] sm:$0xff] %v577
  %610 = vst [vmem:[#allocation2 + $0x58] sm:$0xff] %v578
  %611 = vst [vmem:[#allocation2 + $0x60] sm:$0xff] %v579
  %612 = vst [vmem:[#allocation2 + $0x68] sm:$0xff] %v580
  %613 = vst [vmem:[#allocation2 + $0x70] sm:$0xff] %v581
  %614 = vst [vmem:[#allocation2 + $0x78] sm:$0xff] %v582
  %615 = vst [vmem:[#allocation2 + $0x80] sm:$0xff] %v583
  %616 = vst [vmem:[#allocation2 + $0x88] sm:$0xff] %v584
  %617 = vst [vmem:[#allocation2 + $0x90] sm:$0xff] %v585
  %618 = vst [vmem:[#allocation2 + $0x98] sm:$0xff] %v586
  %619 = vst [vmem:[#allocation2 + $0xa0] sm:$0xff] %v587
  %620 = vst [vmem:[#allocation2 + $0xa8] sm:$0xff] %v588
  %621 = vst [vmem:[#allocation2 + $0xb0] sm:$0xff] %v589
  %622 = vst [vmem:[#allocation2 + $0xb8] sm:$0xff] %v590
  %623 = vst [vmem:[#allocation2 + $0xc0] sm:$0xff] %v591
  %624 = vst [vmem:[#allocation2 + $0xc8] sm:$0xff] %v592
  %625 = vst [vmem:[#allocation2 + $0xd0] sm:$0xff] %v593
  %626 = vst [vmem:[#allocation2 + $0xd8] sm:$0xff] %v594
  %627 = vst [vmem:[#allocation2 + $0xe0] sm:$0xff] %v595
  %628 = vst [vmem:[#allocation2 + $0xe8] sm:$0xff] %v596
  %629 = vst [vmem:[#allocation2 + $0xf0] sm:$0xff] %v597
  %630 = vst [vmem:[#allocation2 + $0xf8] sm:$0xff] %v598
  // Predicated region
  $region22: #{gcn_net_forward.4} parent=0 // pred_check
    %p631 = pneg %p18
  $region23: #{gcn_net_forward.4} parent=0 // pred_check_branch
    %633 = sbr.rel (%p631) target = $region25
  $region24: #{gcn_net_forward.4} parent=0 // pred_region
    %v634 = vld [vmem:[#allocation2] sm:$0xff]
    %v635 = vld [vmem:[#allocation2 + $0x8] sm:$0xff]
    %v636 = vld [vmem:[#allocation2 + $0x10] sm:$0xff]
    %v637 = vld [vmem:[#allocation2 + $0x18] sm:$0xff]
    %v638 = vld [vmem:[#allocation2 + $0x20] sm:$0xff]
    %v639 = vld [vmem:[#allocation2 + $0x28] sm:$0xff]
    %v640 = vld [vmem:[#allocation2 + $0x30] sm:$0xff]
    %v641 = vld [vmem:[#allocation2 + $0x38] sm:$0xff]
    %v642 = vld [vmem:[#allocation2 + $0x40] sm:$0xff]
    %v643 = vld [vmem:[#allocation2 + $0x48] sm:$0xff]
    %v644 = vld [vmem:[#allocation2 + $0x50] sm:$0xff]
    %v645 = vld [vmem:[#allocation2 + $0x58] sm:$0xff]
    %v646 = vld [vmem:[#allocation2 + $0x60] sm:$0xff]
    %v647 = vld [vmem:[#allocation2 + $0x68] sm:$0xff]
    %v648 = vld [vmem:[#allocation2 + $0x70] sm:$0xff]
    %v649 = vld [vmem:[#allocation2 + $0x78] sm:$0xff]
    %v650 = vld [vmem:[#allocation2 + $0x80] sm:$0xff]
    %v651 = vld [vmem:[#allocation2 + $0x88] sm:$0xff]
    %v652 = vld [vmem:[#allocation2 + $0x90] sm:$0xff]
    %v653 = vld [vmem:[#allocation2 + $0x98] sm:$0xff]
    %v654 = vld [vmem:[#allocation2 + $0xa0] sm:$0xff]
    %v655 = vld [vmem:[#allocation2 + $0xa8] sm:$0xff]
    %v656 = vld [vmem:[#allocation2 + $0xb0] sm:$0xff]
    %v657 = vld [vmem:[#allocation2 + $0xb8] sm:$0xff]
    %v658 = vld [vmem:[#allocation2 + $0xc0] sm:$0xff]
    %v659 = vld [vmem:[#allocation2 + $0xc8] sm:$0xff]
    %v660 = vld [vmem:[#allocation2 + $0xd0] sm:$0xff]
    %v661 = vld [vmem:[#allocation2 + $0xd8] sm:$0xff]
    %v662 = vld [vmem:[#allocation2 + $0xe0] sm:$0xff]
    %v663 = vld [vmem:[#allocation2 + $0xe8] sm:$0xff]
    %v664 = vld [vmem:[#allocation2 + $0xf0] sm:$0xff]
    %v665 = vld [vmem:[#allocation2 + $0xf8] sm:$0xff]
    %v666 = vmax.f32 %v634, 0.0
    %v667 = vmax.f32 %v635, 0.0
    %v668 = vmax.f32 %v636, 0.0
    %v669 = vmax.f32 %v637, 0.0
    %v670 = vmax.f32 %v638, 0.0
    %v671 = vmax.f32 %v639, 0.0
    %v672 = vmax.f32 %v640, 0.0
    %v673 = vmax.f32 %v641, 0.0
    %v674 = vmax.f32 %v642, 0.0
    %v675 = vmax.f32 %v643, 0.0
    %v676 = vmax.f32 %v644, 0.0
    %v677 = vmax.f32 %v645, 0.0
    %v678 = vmax.f32 %v646, 0.0
    %v679 = vmax.f32 %v647, 0.0
    %v680 = vmax.f32 %v648, 0.0
    %v681 = vmax.f32 %v649, 0.0
    %v682 = vmax.f32 %v650, 0.0
    %v683 = vmax.f32 %v651, 0.0
    %v684 = vmax.f32 %v652, 0.0
    %v685 = vmax.f32 %v653, 0.0
    %v686 = vmax.f32 %v654, 0.0
    %v687 = vmax.f32 %v655, 0.0
    %v688 = vmax.f32 %v656, 0.0
    %v689 = vmax.f32 %v657, 0.0
    %v690 = vmax.f32 %v658, 0.0
    %v691 = vmax.f32 %v659, 0.0
    %v692 = vmax.f32 %v660, 0.0
    %v693 = vmax.f32 %v661, 0.0
    %v694 = vmax.f32 %v662, 0.0
    %v695 = vmax.f32 %v663, 0.0
    %v696 = vmax.f32 %v664, 0.0
    %v697 = vmax.f32 %v665, 0.0
    %v698 = vpack.c.bf16 %v667, %v666
    %v699 = vpack.c.bf16 %v669, %v668
    %v700 = vpack.c.bf16 %v671, %v670
    %v701 = vpack.c.bf16 %v673, %v672
    %v702 = vpack.c.bf16 %v675, %v674
    %v703 = vpack.c.bf16 %v677, %v676
    %v704 = vpack.c.bf16 %v679, %v678
    %v705 = vpack.c.bf16 %v681, %v680
    %v706 = vpack.c.bf16 %v683, %v682
    %v707 = vpack.c.bf16 %v685, %v684
    %v708 = vpack.c.bf16 %v687, %v686
    %v709 = vpack.c.bf16 %v689, %v688
    %v710 = vpack.c.bf16 %v691, %v690
    %v711 = vpack.c.bf16 %v693, %v692
    %v712 = vpack.c.bf16 %v695, %v694
    %v713 = vpack.c.bf16 %v697, %v696
    %v714 = vld [vmem:[%s2] sm:$0xf]
    %v715 = vld [vmem:[%s2 + $0x4] sm:$0xf]
    %v716 = vld [vmem:[%s2 + $0x8] sm:$0xf]
    %v717 = vld [vmem:[%s2 + $0xc] sm:$0xf]
    %v718 = vld [vmem:[%s2 + $0x10] sm:$0xf]
    %v719 = vld [vmem:[%s2 + $0x14] sm:$0xf]
    %v720 = vld [vmem:[%s2 + $0x18] sm:$0xf]
    %v721 = vld [vmem:[%s2 + $0x1c] sm:$0xf]
    %v722 = vld [vmem:[%s2 + $0x20] sm:$0xf]
    %v723 = vld [vmem:[%s2 + $0x24] sm:$0xf]
    %v724 = vld [vmem:[%s2 + $0x28] sm:$0xf]
    %v725 = vld [vmem:[%s2 + $0x2c] sm:$0xf]
    %v726 = vld [vmem:[%s2 + $0x30] sm:$0xf]
    %v727 = vld [vmem:[%s2 + $0x34] sm:$0xf]
    %v728 = vld [vmem:[%s2 + $0x38] sm:$0xf]
    %v729 = vld [vmem:[%s2 + $0x3c] sm:$0xf]
    %v730 = vld [vmem:[%s3] sm:$0x1]
    %v732 = vlaneseq
    %v733 = vshrl.u32 %v732, 7
    %v734 = vsub.s32 0, %v733
    %v735 = vrot.slane %v730, %v734
    %v753 = vunpack.c.l.b16 %v714
    %v754 = vunpack.c.l.b16 %v715
    %v755 = vunpack.c.l.b16 %v716
    %v756 = vunpack.c.l.b16 %v717
    %v757 = vunpack.c.l.b16 %v718
    %v758 = vunpack.c.l.b16 %v719
    %v759 = vunpack.c.l.b16 %v720
    %v760 = vunpack.c.l.b16 %v721
    %v761 = vunpack.c.l.b16 %v722
    %v762 = vunpack.c.l.b16 %v723
    %v763 = vunpack.c.l.b16 %v724
    %v764 = vunpack.c.l.b16 %v725
    %v765 = vunpack.c.l.b16 %v726
    %v766 = vunpack.c.l.b16 %v727
    %v767 = vunpack.c.l.b16 %v728
    %v768 = vunpack.c.l.b16 %v729
    %v769 = vpack.c.b16 %v754, %v753
    %v770 = vpack.c.b16 %v756, %v755
    %v771 = vpack.c.b16 %v758, %v757
    %v772 = vpack.c.b16 %v760, %v759
    %v773 = vpack.c.b16 %v762, %v761
    %v774 = vpack.c.b16 %v764, %v763
    %v775 = vpack.c.b16 %v766, %v765
    %v776 = vpack.c.b16 %v768, %v767
    %785 = vmatprep.subr.bf16.mxu0 0
    %786 = vmatpush1.bf16.msra.mxu0 %v769
    %787 = vmatprep.subr.bf16.mxu0 0
    %788 = vmatpush1.bf16.msra.mxu0 %v770
    %789 = vmatprep.subr.bf16.mxu0 0
    %790 = vmatpush1.bf16.msra.mxu0 %v771
    %791 = vmatprep.subr.bf16.mxu0 0
    %792 = vmatpush1.bf16.msra.mxu0 %v772
    %793 = vmatprep.subr.bf16.mxu0 0
    %794 = vmatpush1.bf16.msra.mxu0 %v773
    %795 = vmatprep.subr.bf16.mxu0 0
    %796 = vmatpush1.bf16.msra.mxu0 %v774
    %797 = vmatprep.subr.bf16.mxu0 0
    %798 = vmatpush1.bf16.msra.mxu0 %v775
    %799 = vmatprep.subr.bf16.mxu0 0
    %800 = vmatpush1.bf16.msra.mxu0 %v776
    %801 = vmatprep.subr.bf16.mxu0 0
    %802 = vmatpush1.bf16.msra.mxu0 0
    %803 = vmatprep.subr.bf16.mxu0 0
    %804 = vmatpush1.bf16.msra.mxu0 0
    %805 = vmatprep.subr.bf16.mxu0 0
    %806 = vmatpush1.bf16.msra.mxu0 0
    %807 = vmatprep.subr.bf16.mxu0 0
    %808 = vmatpush1.bf16.msra.mxu0 0
    %809 = vmatprep.subr.bf16.mxu0 0
    %810 = vmatpush1.bf16.msra.mxu0 0
    %811 = vmatprep.subr.bf16.mxu0 0
    %812 = vmatpush1.bf16.msra.mxu0 0
    %813 = vmatprep.subr.bf16.mxu0 0
    %814 = vmatpush1.bf16.msra.mxu0 0
    %815 = vmatprep.subr.bf16.mxu0 0
    %816 = vmatpush1.bf16.msra.mxu0 0
    %817 = vmatprep.mubr.bf16.mxu0 0
    %818 = vmatmul.mubr.bf16.gmra.mrb[0].mxu0 %v698
    %v819 = vpop.f32.mrb[0].mxu0
    %v820 = vadd.f32 %v735, %v819
    %v821 = vpop.f32.mrb[0].mxu0
    %v822 = vpop.f32.mrb[0].mxu0
    %v823 = vadd.f32 %v735, %v822
    %v824 = vpop.f32.mrb[0].mxu0
    %825 = vmatprep.mubr.bf16.mxu0 0
    %826 = vmatmul.mubr.bf16.gmra.mrb[0].mxu0 %v699
    %v827 = vpop.f32.mrb[0].mxu0
    %v828 = vadd.f32 %v735, %v827
    %v829 = vpop.f32.mrb[0].mxu0
    %v830 = vpop.f32.mrb[0].mxu0
    %v831 = vadd.f32 %v735, %v830
    %v832 = vpop.f32.mrb[0].mxu0
    %833 = vmatprep.mubr.bf16.mxu0 0
    %834 = vmatmul.mubr.bf16.gmra.mrb[0].mxu0 %v700
    %v835 = vpop.f32.mrb[0].mxu0
    %v836 = vadd.f32 %v735, %v835
    %v837 = vpop.f32.mrb[0].mxu0
    %v838 = vpop.f32.mrb[0].mxu0
    %v839 = vadd.f32 %v735, %v838
    %v840 = vpop.f32.mrb[0].mxu0
    %841 = vmatprep.mubr.bf16.mxu0 0
    %842 = vmatmul.mubr.bf16.gmra.mrb[0].mxu0 %v701
    %v843 = vpop.f32.mrb[0].mxu0
    %v844 = vadd.f32 %v735, %v843
    %v845 = vpop.f32.mrb[0].mxu0
    %v846 = vpop.f32.mrb[0].mxu0
    %v847 = vadd.f32 %v735, %v846
    %v848 = vpop.f32.mrb[0].mxu0
    %849 = vmatprep.mubr.bf16.mxu0 0
    %850 = vmatmul.mubr.bf16.gmra.mrb[0].mxu0 %v702
    %v851 = vpop.f32.mrb[0].mxu0
    %v852 = vadd.f32 %v735, %v851
    %v853 = vpop.f32.mrb[0].mxu0
    %v854 = vpop.f32.mrb[0].mxu0
    %v855 = vadd.f32 %v735, %v854
    %v856 = vpop.f32.mrb[0].mxu0
    %857 = vmatprep.mubr.bf16.mxu0 0
    %858 = vmatmul.mubr.bf16.gmra.mrb[0].mxu0 %v703
    %v859 = vpop.f32.mrb[0].mxu0
    %v860 = vadd.f32 %v735, %v859
    %v861 = vpop.f32.mrb[0].mxu0
    %v862 = vpop.f32.mrb[0].mxu0
    %v863 = vadd.f32 %v735, %v862
    %v864 = vpop.f32.mrb[0].mxu0
    %865 = vmatprep.mubr.bf16.mxu0 0
    %866 = vmatmul.mubr.bf16.gmra.mrb[0].mxu0 %v704
    %v867 = vpop.f32.mrb[0].mxu0
    %v868 = vadd.f32 %v735, %v867
    %v869 = vpop.f32.mrb[0].mxu0
    %v870 = vpop.f32.mrb[0].mxu0
    %v871 = vadd.f32 %v735, %v870
    %v872 = vpop.f32.mrb[0].mxu0
    %873 = vmatprep.mubr.bf16.mxu0 0
    %874 = vmatmul.mubr.bf16.gmra.mrb[0].mxu0 %v705
    %v875 = vpop.f32.mrb[0].mxu0
    %v876 = vadd.f32 %v735, %v875
    %v877 = vpop.f32.mrb[0].mxu0
    %v878 = vpop.f32.mrb[0].mxu0
    %v879 = vadd.f32 %v735, %v878
    %v880 = vpop.f32.mrb[0].mxu0
    %881 = vmatprep.mubr.bf16.mxu0 0
    %882 = vmatmul.mubr.bf16.gmra.mrb[0].mxu0 %v706
    %v883 = vpop.f32.mrb[0].mxu0
    %v884 = vadd.f32 %v735, %v883
    %v885 = vpop.f32.mrb[0].mxu0
    %v886 = vpop.f32.mrb[0].mxu0
    %v887 = vadd.f32 %v735, %v886
    %v888 = vpop.f32.mrb[0].mxu0
    %889 = vmatprep.mubr.bf16.mxu0 0
    %890 = vmatmul.mubr.bf16.gmra.mrb[0].mxu0 %v707
    %v891 = vpop.f32.mrb[0].mxu0
    %v892 = vadd.f32 %v735, %v891
    %v893 = vpop.f32.mrb[0].mxu0
    %v894 = vpop.f32.mrb[0].mxu0
    %v895 = vadd.f32 %v735, %v894
    %v896 = vpop.f32.mrb[0].mxu0
    %897 = vmatprep.mubr.bf16.mxu0 0
    %898 = vmatmul.mubr.bf16.gmra.mrb[0].mxu0 %v708
    %v899 = vpop.f32.mrb[0].mxu0
    %v900 = vadd.f32 %v735, %v899
    %v901 = vpop.f32.mrb[0].mxu0
    %v902 = vpop.f32.mrb[0].mxu0
    %v903 = vadd.f32 %v735, %v902
    %v904 = vpop.f32.mrb[0].mxu0
    %905 = vmatprep.mubr.bf16.mxu0 0
    %906 = vmatmul.mubr.bf16.gmra.mrb[0].mxu0 %v709
    %v907 = vpop.f32.mrb[0].mxu0
    %v908 = vadd.f32 %v735, %v907
    %v909 = vpop.f32.mrb[0].mxu0
    %v910 = vpop.f32.mrb[0].mxu0
    %v911 = vadd.f32 %v735, %v910
    %v912 = vpop.f32.mrb[0].mxu0
    %913 = vmatprep.mubr.bf16.mxu0 0
    %914 = vmatmul.mubr.bf16.gmra.mrb[0].mxu0 %v710
    %v915 = vpop.f32.mrb[0].mxu0
    %v916 = vadd.f32 %v735, %v915
    %v917 = vpop.f32.mrb[0].mxu0
    %v918 = vpop.f32.mrb[0].mxu0
    %v919 = vadd.f32 %v735, %v918
    %v920 = vpop.f32.mrb[0].mxu0
    %921 = vmatprep.mubr.bf16.mxu0 0
    %922 = vmatmul.mubr.bf16.gmra.mrb[0].mxu0 %v711
    %v923 = vpop.f32.mrb[0].mxu0
    %v924 = vadd.f32 %v735, %v923
    %v925 = vpop.f32.mrb[0].mxu0
    %v926 = vpop.f32.mrb[0].mxu0
    %v927 = vadd.f32 %v735, %v926
    %v928 = vpop.f32.mrb[0].mxu0
    %929 = vmatprep.mubr.bf16.mxu0 0
    %930 = vmatmul.mubr.bf16.gmra.mrb[0].mxu0 %v712
    %v931 = vpop.f32.mrb[0].mxu0
    %v932 = vadd.f32 %v735, %v931
    %v933 = vpop.f32.mrb[0].mxu0
    %v934 = vpop.f32.mrb[0].mxu0
    %v935 = vadd.f32 %v735, %v934
    %v936 = vpop.f32.mrb[0].mxu0
    %937 = vmatprep.mubr.bf16.mxu0 0
    %938 = vmatmul.mubr.bf16.gmra.mrb[0].mxu0 %v713
    %v939 = vpop.f32.mrb[0].mxu0
    %v940 = vadd.f32 %v735, %v939
    %v941 = vpop.f32.mrb[0].mxu0
    %v942 = vpop.f32.mrb[0].mxu0
    %v943 = vadd.f32 %v735, %v942
    %v944 = vpop.f32.mrb[0].mxu0
    %945 = vdwg.mxu0
    %v946 = vpack.c.bf16 %v823, %v820
    %v947 = vpack.c.bf16 %v831, %v828
    %v948 = vpack.c.bf16 %v839, %v836
    %v949 = vpack.c.bf16 %v847, %v844
    %v950 = vpack.c.bf16 %v855, %v852
    %v951 = vpack.c.bf16 %v863, %v860
    %v952 = vpack.c.bf16 %v871, %v868
    %v953 = vpack.c.bf16 %v879, %v876
    %v954 = vpack.c.bf16 %v887, %v884
    %v955 = vpack.c.bf16 %v895, %v892
    %v956 = vpack.c.bf16 %v903, %v900
    %v957 = vpack.c.bf16 %v911, %v908
    %v958 = vpack.c.bf16 %v919, %v916
    %v959 = vpack.c.bf16 %v927, %v924
    %v960 = vpack.c.bf16 %v935, %v932
    %v961 = vpack.c.bf16 %v943, %v940
    %v978 = vunpack.c.l.b16 %v946
    %v979 = vunpack.c.h.b16 %v946
    %v980 = vunpack.c.l.b16 %v947
    %v981 = vunpack.c.h.b16 %v947
    %v982 = vunpack.c.l.b16 %v948
    %v983 = vunpack.c.h.b16 %v948
    %v984 = vunpack.c.l.b16 %v949
    %v985 = vunpack.c.h.b16 %v949
    %v986 = vunpack.c.l.b16 %v950
    %v987 = vunpack.c.h.b16 %v950
    %v988 = vunpack.c.l.b16 %v951
    %v989 = vunpack.c.h.b16 %v951
    %v990 = vunpack.c.l.b16 %v952
    %v991 = vunpack.c.h.b16 %v952
    %v992 = vunpack.c.l.b16 %v953
    %v993 = vunpack.c.h.b16 %v953
    %v994 = vunpack.c.l.b16 %v954
    %v995 = vunpack.c.h.b16 %v954
    %v996 = vunpack.c.l.b16 %v955
    %v997 = vunpack.c.h.b16 %v955
    %v998 = vunpack.c.l.b16 %v956
    %v999 = vunpack.c.h.b16 %v956
    %v1000 = vunpack.c.l.b16 %v957
    %v1001 = vunpack.c.h.b16 %v957
    %v1002 = vunpack.c.l.b16 %v958
    %v1003 = vunpack.c.h.b16 %v958
    %v1004 = vunpack.c.l.b16 %v959
    %v1005 = vunpack.c.h.b16 %v959
    %v1006 = vunpack.c.l.b16 %v960
    %v1007 = vunpack.c.h.b16 %v960
    %v1008 = vunpack.c.l.b16 %v961
    %v1009 = vunpack.c.h.b16 %v961
    %v1010 = vpack.c.b16 %v978, %v978
    %v1011 = vpack.c.b16 %v979, %v979
    %v1012 = vpack.c.b16 %v980, %v980
    %v1013 = vpack.c.b16 %v981, %v981
    %v1014 = vpack.c.b16 %v982, %v982
    %v1015 = vpack.c.b16 %v983, %v983
    %v1016 = vpack.c.b16 %v984, %v984
    %v1017 = vpack.c.b16 %v985, %v985
    %v1018 = vpack.c.b16 %v986, %v986
    %v1019 = vpack.c.b16 %v987, %v987
    %v1020 = vpack.c.b16 %v988, %v988
    %v1021 = vpack.c.b16 %v989, %v989
    %v1022 = vpack.c.b16 %v990, %v990
    %v1023 = vpack.c.b16 %v991, %v991
    %v1024 = vpack.c.b16 %v992, %v992
    %v1025 = vpack.c.b16 %v993, %v993
    %v1026 = vpack.c.b16 %v994, %v994
    %v1027 = vpack.c.b16 %v995, %v995
    %v1028 = vpack.c.b16 %v996, %v996
    %v1029 = vpack.c.b16 %v997, %v997
    %v1030 = vpack.c.b16 %v998, %v998
    %v1031 = vpack.c.b16 %v999, %v999
    %v1032 = vpack.c.b16 %v1000, %v1000
    %v1033 = vpack.c.b16 %v1001, %v1001
    %v1034 = vpack.c.b16 %v1002, %v1002
    %v1035 = vpack.c.b16 %v1003, %v1003
    %v1036 = vpack.c.b16 %v1004, %v1004
    %v1037 = vpack.c.b16 %v1005, %v1005
    %v1038 = vpack.c.b16 %v1006, %v1006
    %v1039 = vpack.c.b16 %v1007, %v1007
    %v1040 = vpack.c.b16 %v1008, %v1008
    %v1041 = vpack.c.b16 %v1009, %v1009
    %1074 = vst [vmem:[%s4] sm:$0xf] %v1010
    %1075 = vst [vmem:[%s4 + $0x4] sm:$0xf] %v1011
    %1076 = vst [vmem:[%s4 + $0x8] sm:$0xf] %v1012
    %1077 = vst [vmem:[%s4 + $0xc] sm:$0xf] %v1013
    %1078 = vst [vmem:[%s4 + $0x10] sm:$0xf] %v1014
    %1079 = vst [vmem:[%s4 + $0x14] sm:$0xf] %v1015
    %1080 = vst [vmem:[%s4 + $0x18] sm:$0xf] %v1016
    %1081 = vst [vmem:[%s4 + $0x1c] sm:$0xf] %v1017
    %1082 = vst [vmem:[%s4 + $0x20] sm:$0xf] %v1018
    %1083 = vst [vmem:[%s4 + $0x24] sm:$0xf] %v1019
    %1084 = vst [vmem:[%s4 + $0x28] sm:$0xf] %v1020
    %1085 = vst [vmem:[%s4 + $0x2c] sm:$0xf] %v1021
    %1086 = vst [vmem:[%s4 + $0x30] sm:$0xf] %v1022
    %1087 = vst [vmem:[%s4 + $0x34] sm:$0xf] %v1023
    %1088 = vst [vmem:[%s4 + $0x38] sm:$0xf] %v1024
    %1089 = vst [vmem:[%s4 + $0x3c] sm:$0xf] %v1025
    %1090 = vst [vmem:[%s4 + $0x40] sm:$0xf] %v1026
    %1091 = vst [vmem:[%s4 + $0x44] sm:$0xf] %v1027
    %1092 = vst [vmem:[%s4 + $0x48] sm:$0xf] %v1028
    %1093 = vst [vmem:[%s4 + $0x4c] sm:$0xf] %v1029
    %1094 = vst [vmem:[%s4 + $0x50] sm:$0xf] %v1030
    %1095 = vst [vmem:[%s4 + $0x54] sm:$0xf] %v1031
    %1096 = vst [vmem:[%s4 + $0x58] sm:$0xf] %v1032
    %1097 = vst [vmem:[%s4 + $0x5c] sm:$0xf] %v1033
    %1098 = vst [vmem:[%s4 + $0x60] sm:$0xf] %v1034
    %1099 = vst [vmem:[%s4 + $0x64] sm:$0xf] %v1035
    %1100 = vst [vmem:[%s4 + $0x68] sm:$0xf] %v1036
    %1101 = vst [vmem:[%s4 + $0x6c] sm:$0xf] %v1037
    %1102 = vst [vmem:[%s4 + $0x70] sm:$0xf] %v1038
    %1103 = vst [vmem:[%s4 + $0x74] sm:$0xf] %v1039
    %1104 = vst [vmem:[%s4 + $0x78] sm:$0xf] %v1040
    %1105 = vst [vmem:[%s4 + $0x7c] sm:$0xf] %v1041
  $region25: #{gcn_net_forward.4} parent=0 // pred_fallthru
    _
  // Predicated region
  $region26: #{gcn_net_forward.4} parent=0 // pred_check
    _
  $region27: #{gcn_net_forward.4} parent=0 // pred_check_branch
    %1107 = sbr.rel (0) target = $region29
  $region28: #{gcn_net_forward.4} parent=0 // pred_region
    _
  $region29: #{gcn_net_forward.4} parent=0 // pred_fallthru
    _
  // Predicated region
  $region30: #{gcn_net_forward.4} parent=0 // pred_check
    _
  $region31: #{gcn_net_forward.4} parent=0 // pred_check_branch
    %1109 = sbr.rel (0) target = $region33
  $region32: #{gcn_net_forward.4} parent=0 // pred_region
    _
  $region33: #{gcn_net_forward.4} parent=0 // pred_fallthru
    _

</llo_original>
